<compile_context>
chip_gen: v7x
topology: tpu7x:2x2x1
jax: 0.10.0
libtpu: 0.0.40
codegen_flags: <defaults>
</compile_context>

<pallas_src>
import functools

import jax
import jax.numpy as jnp
from jax.experimental import pallas as pl
from jax.experimental.pallas import tpu as pltpu


def _round_up(x, m):
    return (x + m - 1) // m * m


def _local_conv_kernel(*refs, n_batch, has_bias):
    """One (P-tile, O-tile) block of the locally-connected conv.

    xp_ref : (CK*N, TP)    patches, compute dtype (bf16/f32), P on lanes
    w_ref  : (CK, TO, TP)  per-position local filters, compute dtype
    b_ref  : (TO, TP)      f32 bias (only when has_bias)
    out_ref: (N, TO, TP)   f32 output
    """
    if has_bias:
        xp_ref, w_ref, b_ref, out_ref = refs
    else:
        xp_ref, w_ref, out_ref = refs
        b_ref = None

    ck_total = w_ref.shape[0]
    # TODO(synk): for large CK (big C or kernel) add CK as an innermost
    # "arbitrary" grid axis with a VMEM f32 accumulator (pl.when init/final)
    # instead of this full static unroll.
    for n in range(n_batch):
        # Per-batch accumulator: (TO, TP) f32, sized (<= 64 KiB) to stay in
        # the 64-vreg file; it is stored before the next batch row starts.
        acc = (xp_ref[pl.ds(n, 1), :].astype(jnp.float32)
               * w_ref[0].astype(jnp.float32))
        for c in range(1, ck_total):
            acc = acc + (xp_ref[pl.ds(c * n_batch + n, 1), :].astype(jnp.float32)
                         * w_ref[c].astype(jnp.float32))
        if has_bias:
            acc = acc + b_ref[...]
        out_ref[n] = acc.astype(out_ref.dtype)


def _choose_tiles(O, P, compute_dtype):
    # --- P (lane) tiling ----------------------------------------------------
    P_pad = _round_up(P, 128)
    if P_pad < 512:
        block_p = P_pad                       # small map: single lane tile
    else:
        # Largest block <= 1024 that wastes the least padding while still
        # producing >= 2 P-tiles (keeps both v7x TensorCores busy).
        best = None
        for b in range(128, 1025, 128):
            padded = _round_up(P_pad, b)
            if padded // b < 2:
                continue
            key = (padded - P_pad, -b)
            if best is None or key < best[0]:
                best = (key, b, padded)
        _, block_p, P_pad = best

    # --- O (sublane) tiling ---------------------------------------------------
    # Cap block_o so the per-batch f32 accumulator (block_o * block_p * 4 B)
    # stays <= 64 KiB (16 of 64 vregs); pick the candidate with least padding.
    acc_budget = 64 * 1024
    sub = 8 if jnp.dtype(compute_dtype).itemsize >= 4 else 16  # bf16 packs 16 rows
    O_full = _round_up(O, 8)
    candidates = []
    if O_full * block_p * 4 <= acc_budget:
        candidates.append((O_full, O_full))   # single full-extent O tile
    for b in range(sub, 33, sub):
        if b * block_p * 4 <= acc_budget:
            candidates.append((b, _round_up(O, b)))
    if not candidates:
        candidates.append((sub, _round_up(O, sub)))
    block_o, O_pad = min(candidates, key=lambda t: (t[1] - O, -t[0]))
    return block_p, P_pad, block_o, O_pad


def make_local_conv2d(weight, bias, *, kernel_size, stride, input_shape,
                      compute_dtype=jnp.bfloat16):
    """Builds a jitted forward(x) for LocalConv2d.

    The weight repack/pad/cast (the largest tensor) is hoisted here and done
    exactly once, since weight/bias are parameters.
    """
    kh, kw = kernel_size
    dh, dw = stride
    N, C, H, W = input_shape
    _, O, Cw, OH, OW, K = weight.shape
    assert Cw == C and K == kh * kw
    assert OH == (H - kh) // dh + 1 and OW == (W - kw) // dw + 1

    P = OH * OW
    CK = C * K
    has_bias = bias is not None

    block_p, P_pad, block_o, O_pad = _choose_tiles(O, P, compute_dtype)

    # ---- hoisted parameter repack (runs once) -------------------------------
    # weight[0]: (O, C, OH, OW, K) -> (C, K, O, OH, OW) -> (CK, O, P)
    w = jnp.transpose(weight[0], (1, 4, 0, 2, 3)).reshape(CK, O, P)
    w = jnp.pad(w, ((0, 0), (0, O_pad - O), (0, P_pad - P))).astype(compute_dtype)
    if has_bias:
        b = bias.reshape(O, P)
        b = jnp.pad(b, ((0, O_pad - O), (0, P_pad - P))).astype(jnp.float32)

    # p outermost, o innermost: xp block index (0, p) is constant across the
    # inner o steps, so Pallas does not re-DMA the patch tile per O-tile.
    grid = (P_pad // block_p, O_pad // block_o)

    in_specs = [
        pl.BlockSpec((CK * N, block_p), lambda p, o: (0, p)),          # patches
        pl.BlockSpec((CK, block_o, block_p), lambda p, o: (0, o, p)),  # filters
    ]
    if has_bias:
        in_specs.append(pl.BlockSpec((block_o, block_p), lambda p, o: (o, p)))

    kernel = functools.partial(_local_conv_kernel, n_batch=N, has_bias=has_bias)

    # Explicit scoped-VMEM request with headroom, capped at v7x's 64 MiB.
    itemsize = jnp.dtype(compute_dtype).itemsize
    est = 2 * (CK * block_o * block_p * itemsize          # w (double-buffered)
               + CK * N * block_p * itemsize              # xp
               + N * block_o * block_p * 4                # out
               + (block_o * block_p * 4 if has_bias else 0))
    vmem_limit = int(min(64 * 1024 * 1024, max(16 * 1024 * 1024, 2 * est)))

    conv = pl.pallas_call(
        kernel,
        out_shape=jax.ShapeDtypeStruct((N, O_pad, P_pad), jnp.float32),
        grid_spec=pltpu.PrefetchScalarGridSpec(
            num_scalar_prefetch=0,
            grid=grid,
            in_specs=in_specs,
            out_specs=pl.BlockSpec((N, block_o, block_p), lambda p, o: (0, o, p)),
        ),
        compiler_params=pltpu.CompilerParams(
            dimension_semantics=("parallel", "parallel"),
            vmem_limit_bytes=vmem_limit),
    )

    def forward(x):
        assert x.shape == (N, C, H, W)
        # Unfold via kh*kw static strided slices (no gather).
        taps = []
        for i in range(kh):
            for j in range(kw):
                taps.append(x[:, :, i:i + dh * OH:dh, j:j + dw * OW:dw])  # (N,C,OH,OW)
        cols = jnp.stack(taps, axis=0)                                   # (K,N,C,OH,OW)
        xp = jnp.transpose(cols, (2, 0, 1, 3, 4)).reshape(CK * N, P)     # (CK*N,P)
        xp = jnp.pad(xp, ((0, 0), (0, P_pad - P))).astype(compute_dtype)
        if has_bias:
            out_pad = conv(xp, w, b)
        else:
            out_pad = conv(xp, w)
        return out_pad[:, :O, :P].reshape(N, O, OH, OW)

    return jax.jit(forward)


if __name__ == "__main__":
    key = jax.random.PRNGKey(0)
    N, C, H, W = 2, 4, 16, 16
    O = 4
    k, s = 3, 1
    OH = (H - k) // s + 1
    OW = (W - k) // s + 1

    kx, kw_, kb = jax.random.split(key, 3)
    x = jax.random.normal(kx, (N, C, H, W), dtype=jnp.float32)
    # weight mirrors nn.Parameter(torch.randn(1, O, C, OH, OW, k*k))
    weight = jax.random.normal(kw_, (1, O, C, OH, OW, k * k), dtype=jnp.float32)
    bias = jax.random.normal(kb, (1, O, OH, OW), dtype=jnp.float32)

    # ---- pure-JAX reference (same math as the PyTorch forward), using the
    # ---- same bf16-quantized inputs the kernel streams, f32 accumulation.
    xq = x.astype(jnp.bfloat16).astype(jnp.float32)
    wq = weight.astype(jnp.bfloat16).astype(jnp.float32)
    i_idx = (jnp.arange(OH) * s)[:, None] + jnp.arange(k)[None, :]
    j_idx = (jnp.arange(OW) * s)[:, None] + jnp.arange(k)[None, :]
    patches = xq[:, :, i_idx[:, None, :, None], j_idx[None, :, None, :]].reshape(
        N, C, OH, OW, k * k)
    ref = jnp.sum(patches[:, None] * wq, axis=(2, -1))

    # no-bias path (module default: bias=False)
    fwd = make_local_conv2d(weight, None, kernel_size=(k, k), stride=(s, s),
                            input_shape=(N, C, H, W))
    out = jax.block_until_ready(fwd(x))
    assert out.shape == (N, O, OH, OW), out.shape
    assert jnp.allclose(out, ref, atol=2e-3, rtol=2e-3), float(
        jnp.max(jnp.abs(out - ref)))

    # fused-bias path
    fwd_b = make_local_conv2d(weight, bias, kernel_size=(k, k), stride=(s, s),
                              input_shape=(N, C, H, W))
    out_b = jax.block_until_ready(fwd_b(x))
    assert jnp.allclose(out_b, ref + bias, atol=2e-3, rtol=2e-3), float(
        jnp.max(jnp.abs(out_b - (ref + bias))))

    print("KERNEL_OK")
</pallas_src>

<mosaic_0001>
module attributes {stable_mosaic.version = 11 : i64} {
  func.func @_local_conv_kernel(%arg0: i32, %arg1: i32, %arg2: memref<72x256xbf16, #tpu.memory_space<vmem>>, %arg3: memref<36x8x256xbf16, #tpu.memory_space<vmem>>, %arg4: memref<2x8x256xf32, #tpu.memory_space<vmem>>) attributes {dimension_semantics = [#tpu.dimension_semantics<parallel>, #tpu.dimension_semantics<parallel>], iteration_bounds = array<i64: 1, 1>, scalar_prefetch = 0 : i64, scratch_operands = 0 : i64, tpu.core_type = #tpu.core_type<tc>, window_params = [{transform_indices = @transform_0, window_bounds = array<i64: 72, 256>}, {transform_indices = @transform_1, window_bounds = array<i64: 36, 8, 256>}, {transform_indices = @transform_2, window_bounds = array<i64: 2, 8, 256>}]} {
    %c0 = arith.constant 0 : index
    %c0_0 = arith.constant 0 : index
    %0 = vector.load %arg2[%c0, %c0_0] : memref<72x256xbf16, #tpu.memory_space<vmem>>, vector<1x256xbf16>
    %1 = arith.extf %0 : vector<1x256xbf16> to vector<1x256xf32>
    %c0_1 = arith.constant 0 : index
    %c0_2 = arith.constant 0 : index
    %c0_3 = arith.constant 0 : index
    %2 = vector.load %arg3[%c0_1, %c0_2, %c0_3] : memref<36x8x256xbf16, #tpu.memory_space<vmem>>, vector<1x8x256xbf16>
    %3 = vector.shape_cast %2 : vector<1x8x256xbf16> to vector<8x256xbf16>
    %4 = arith.extf %3 : vector<8x256xbf16> to vector<8x256xf32>
    %5 = vector.broadcast %1 : vector<1x256xf32> to vector<8x256xf32>
    %6 = arith.mulf %5, %4 : vector<8x256xf32>
    %c2 = arith.constant 2 : index
    %c0_4 = arith.constant 0 : index
    %7 = vector.load %arg2[%c2, %c0_4] : memref<72x256xbf16, #tpu.memory_space<vmem>>, vector<1x256xbf16>
    %8 = arith.extf %7 : vector<1x256xbf16> to vector<1x256xf32>
    %c1 = arith.constant 1 : index
    %c0_5 = arith.constant 0 : index
    %c0_6 = arith.constant 0 : index
    %9 = vector.load %arg3[%c1, %c0_5, %c0_6] : memref<36x8x256xbf16, #tpu.memory_space<vmem>>, vector<1x8x256xbf16>
    %10 = vector.shape_cast %9 : vector<1x8x256xbf16> to vector<8x256xbf16>
    %11 = arith.extf %10 : vector<8x256xbf16> to vector<8x256xf32>
    %12 = vector.broadcast %8 : vector<1x256xf32> to vector<8x256xf32>
    %13 = arith.mulf %12, %11 : vector<8x256xf32>
    %14 = arith.addf %6, %13 : vector<8x256xf32>
    %c4 = arith.constant 4 : index
    %c0_7 = arith.constant 0 : index
    %15 = vector.load %arg2[%c4, %c0_7] : memref<72x256xbf16, #tpu.memory_space<vmem>>, vector<1x256xbf16>
    %16 = arith.extf %15 : vector<1x256xbf16> to vector<1x256xf32>
    %c2_8 = arith.constant 2 : index
    %c0_9 = arith.constant 0 : index
    %c0_10 = arith.constant 0 : index
    %17 = vector.load %arg3[%c2_8, %c0_9, %c0_10] : memref<36x8x256xbf16, #tpu.memory_space<vmem>>, vector<1x8x256xbf16>
    %18 = vector.shape_cast %17 : vector<1x8x256xbf16> to vector<8x256xbf16>
    %19 = arith.extf %18 : vector<8x256xbf16> to vector<8x256xf32>
    %20 = vector.broadcast %16 : vector<1x256xf32> to vector<8x256xf32>
    %21 = arith.mulf %20, %19 : vector<8x256xf32>
    %22 = arith.addf %14, %21 : vector<8x256xf32>
    %c6 = arith.constant 6 : index
    %c0_11 = arith.constant 0 : index
    %23 = vector.load %arg2[%c6, %c0_11] : memref<72x256xbf16, #tpu.memory_space<vmem>>, vector<1x256xbf16>
    %24 = arith.extf %23 : vector<1x256xbf16> to vector<1x256xf32>
    %c3 = arith.constant 3 : index
    %c0_12 = arith.constant 0 : index
    %c0_13 = arith.constant 0 : index
    %25 = vector.load %arg3[%c3, %c0_12, %c0_13] : memref<36x8x256xbf16, #tpu.memory_space<vmem>>, vector<1x8x256xbf16>
    %26 = vector.shape_cast %25 : vector<1x8x256xbf16> to vector<8x256xbf16>
    %27 = arith.extf %26 : vector<8x256xbf16> to vector<8x256xf32>
    %28 = vector.broadcast %24 : vector<1x256xf32> to vector<8x256xf32>
    %29 = arith.mulf %28, %27 : vector<8x256xf32>
    %30 = arith.addf %22, %29 : vector<8x256xf32>
    %c8 = arith.constant 8 : index
    %c0_14 = arith.constant 0 : index
    %31 = vector.load %arg2[%c8, %c0_14] : memref<72x256xbf16, #tpu.memory_space<vmem>>, vector<1x256xbf16>
    %32 = arith.extf %31 : vector<1x256xbf16> to vector<1x256xf32>
    %c4_15 = arith.constant 4 : index
    %c0_16 = arith.constant 0 : index
    %c0_17 = arith.constant 0 : index
    %33 = vector.load %arg3[%c4_15, %c0_16, %c0_17] : memref<36x8x256xbf16, #tpu.memory_space<vmem>>, vector<1x8x256xbf16>
    %34 = vector.shape_cast %33 : vector<1x8x256xbf16> to vector<8x256xbf16>
    %35 = arith.extf %34 : vector<8x256xbf16> to vector<8x256xf32>
    %36 = vector.broadcast %32 : vector<1x256xf32> to vector<8x256xf32>
    %37 = arith.mulf %36, %35 : vector<8x256xf32>
    %38 = arith.addf %30, %37 : vector<8x256xf32>
    %c10 = arith.constant 10 : index
    %c0_18 = arith.constant 0 : index
    %39 = vector.load %arg2[%c10, %c0_18] : memref<72x256xbf16, #tpu.memory_space<vmem>>, vector<1x256xbf16>
    %40 = arith.extf %39 : vector<1x256xbf16> to vector<1x256xf32>
    %c5 = arith.constant 5 : index
    %c0_19 = arith.constant 0 : index
    %c0_20 = arith.constant 0 : index
    %41 = vector.load %arg3[%c5, %c0_19, %c0_20] : memref<36x8x256xbf16, #tpu.memory_space<vmem>>, vector<1x8x256xbf16>
    %42 = vector.shape_cast %41 : vector<1x8x256xbf16> to vector<8x256xbf16>
    %43 = arith.extf %42 : vector<8x256xbf16> to vector<8x256xf32>
    %44 = vector.broadcast %40 : vector<1x256xf32> to vector<8x256xf32>
    %45 = arith.mulf %44, %43 : vector<8x256xf32>
    %46 = arith.addf %38, %45 : vector<8x256xf32>
    %c12 = arith.constant 12 : index
    %c0_21 = arith.constant 0 : index
    %47 = vector.load %arg2[%c12, %c0_21] : memref<72x256xbf16, #tpu.memory_space<vmem>>, vector<1x256xbf16>
    %48 = arith.extf %47 : vector<1x256xbf16> to vector<1x256xf32>
    %c6_22 = arith.constant 6 : index
    %c0_23 = arith.constant 0 : index
    %c0_24 = arith.constant 0 : index
    %49 = vector.load %arg3[%c6_22, %c0_23, %c0_24] : memref<36x8x256xbf16, #tpu.memory_space<vmem>>, vector<1x8x256xbf16>
    %50 = vector.shape_cast %49 : vector<1x8x256xbf16> to vector<8x256xbf16>
    %51 = arith.extf %50 : vector<8x256xbf16> to vector<8x256xf32>
    %52 = vector.broadcast %48 : vector<1x256xf32> to vector<8x256xf32>
    %53 = arith.mulf %52, %51 : vector<8x256xf32>
    %54 = arith.addf %46, %53 : vector<8x256xf32>
    %c14 = arith.constant 14 : index
    %c0_25 = arith.constant 0 : index
    %55 = vector.load %arg2[%c14, %c0_25] : memref<72x256xbf16, #tpu.memory_space<vmem>>, vector<1x256xbf16>
    %56 = arith.extf %55 : vector<1x256xbf16> to vector<1x256xf32>
    %c7 = arith.constant 7 : index
    %c0_26 = arith.constant 0 : index
    %c0_27 = arith.constant 0 : index
    %57 = vector.load %arg3[%c7, %c0_26, %c0_27] : memref<36x8x256xbf16, #tpu.memory_space<vmem>>, vector<1x8x256xbf16>
    %58 = vector.shape_cast %57 : vector<1x8x256xbf16> to vector<8x256xbf16>
    %59 = arith.extf %58 : vector<8x256xbf16> to vector<8x256xf32>
    %60 = vector.broadcast %56 : vector<1x256xf32> to vector<8x256xf32>
    %61 = arith.mulf %60, %59 : vector<8x256xf32>
    %62 = arith.addf %54, %61 : vector<8x256xf32>
    %c16 = arith.constant 16 : index
    %c0_28 = arith.constant 0 : index
    %63 = vector.load %arg2[%c16, %c0_28] : memref<72x256xbf16, #tpu.memory_space<vmem>>, vector<1x256xbf16>
    %64 = arith.extf %63 : vector<1x256xbf16> to vector<1x256xf32>
    %c8_29 = arith.constant 8 : index
    %c0_30 = arith.constant 0 : index
    %c0_31 = arith.constant 0 : index
    %65 = vector.load %arg3[%c8_29, %c0_30, %c0_31] : memref<36x8x256xbf16, #tpu.memory_space<vmem>>, vector<1x8x256xbf16>
    %66 = vector.shape_cast %65 : vector<1x8x256xbf16> to vector<8x256xbf16>
    %67 = arith.extf %66 : vector<8x256xbf16> to vector<8x256xf32>
    %68 = vector.broadcast %64 : vector<1x256xf32> to vector<8x256xf32>
    %69 = arith.mulf %68, %67 : vector<8x256xf32>
    %70 = arith.addf %62, %69 : vector<8x256xf32>
    %c18 = arith.constant 18 : index
    %c0_32 = arith.constant 0 : index
    %71 = vector.load %arg2[%c18, %c0_32] : memref<72x256xbf16, #tpu.memory_space<vmem>>, vector<1x256xbf16>
    %72 = arith.extf %71 : vector<1x256xbf16> to vector<1x256xf32>
    %c9 = arith.constant 9 : index
    %c0_33 = arith.constant 0 : index
    %c0_34 = arith.constant 0 : index
    %73 = vector.load %arg3[%c9, %c0_33, %c0_34] : memref<36x8x256xbf16, #tpu.memory_space<vmem>>, vector<1x8x256xbf16>
    %74 = vector.shape_cast %73 : vector<1x8x256xbf16> to vector<8x256xbf16>
    %75 = arith.extf %74 : vector<8x256xbf16> to vector<8x256xf32>
    %76 = vector.broadcast %72 : vector<1x256xf32> to vector<8x256xf32>
    %77 = arith.mulf %76, %75 : vector<8x256xf32>
    %78 = arith.addf %70, %77 : vector<8x256xf32>
    %c20 = arith.constant 20 : index
    %c0_35 = arith.constant 0 : index
    %79 = vector.load %arg2[%c20, %c0_35] : memref<72x256xbf16, #tpu.memory_space<vmem>>, vector<1x256xbf16>
    %80 = arith.extf %79 : vector<1x256xbf16> to vector<1x256xf32>
    %c10_36 = arith.constant 10 : index
    %c0_37 = arith.constant 0 : index
    %c0_38 = arith.constant 0 : index
    %81 = vector.load %arg3[%c10_36, %c0_37, %c0_38] : memref<36x8x256xbf16, #tpu.memory_space<vmem>>, vector<1x8x256xbf16>
    %82 = vector.shape_cast %81 : vector<1x8x256xbf16> to vector<8x256xbf16>
    %83 = arith.extf %82 : vector<8x256xbf16> to vector<8x256xf32>
    %84 = vector.broadcast %80 : vector<1x256xf32> to vector<8x256xf32>
    %85 = arith.mulf %84, %83 : vector<8x256xf32>
    %86 = arith.addf %78, %85 : vector<8x256xf32>
    %c22 = arith.constant 22 : index
    %c0_39 = arith.constant 0 : index
    %87 = vector.load %arg2[%c22, %c0_39] : memref<72x256xbf16, #tpu.memory_space<vmem>>, vector<1x256xbf16>
    %88 = arith.extf %87 : vector<1x256xbf16> to vector<1x256xf32>
    %c11 = arith.constant 11 : index
    %c0_40 = arith.constant 0 : index
    %c0_41 = arith.constant 0 : index
    %89 = vector.load %arg3[%c11, %c0_40, %c0_41] : memref<36x8x256xbf16, #tpu.memory_space<vmem>>, vector<1x8x256xbf16>
    %90 = vector.shape_cast %89 : vector<1x8x256xbf16> to vector<8x256xbf16>
    %91 = arith.extf %90 : vector<8x256xbf16> to vector<8x256xf32>
    %92 = vector.broadcast %88 : vector<1x256xf32> to vector<8x256xf32>
    %93 = arith.mulf %92, %91 : vector<8x256xf32>
    %94 = arith.addf %86, %93 : vector<8x256xf32>
    %c24 = arith.constant 24 : index
    %c0_42 = arith.constant 0 : index
    %95 = vector.load %arg2[%c24, %c0_42] : memref<72x256xbf16, #tpu.memory_space<vmem>>, vector<1x256xbf16>
    %96 = arith.extf %95 : vector<1x256xbf16> to vector<1x256xf32>
    %c12_43 = arith.constant 12 : index
    %c0_44 = arith.constant 0 : index
    %c0_45 = arith.constant 0 : index
    %97 = vector.load %arg3[%c12_43, %c0_44, %c0_45] : memref<36x8x256xbf16, #tpu.memory_space<vmem>>, vector<1x8x256xbf16>
    %98 = vector.shape_cast %97 : vector<1x8x256xbf16> to vector<8x256xbf16>
    %99 = arith.extf %98 : vector<8x256xbf16> to vector<8x256xf32>
    %100 = vector.broadcast %96 : vector<1x256xf32> to vector<8x256xf32>
    %101 = arith.mulf %100, %99 : vector<8x256xf32>
    %102 = arith.addf %94, %101 : vector<8x256xf32>
    %c26 = arith.constant 26 : index
    %c0_46 = arith.constant 0 : index
    %103 = vector.load %arg2[%c26, %c0_46] : memref<72x256xbf16, #tpu.memory_space<vmem>>, vector<1x256xbf16>
    %104 = arith.extf %103 : vector<1x256xbf16> to vector<1x256xf32>
    %c13 = arith.constant 13 : index
    %c0_47 = arith.constant 0 : index
    %c0_48 = arith.constant 0 : index
    %105 = vector.load %arg3[%c13, %c0_47, %c0_48] : memref<36x8x256xbf16, #tpu.memory_space<vmem>>, vector<1x8x256xbf16>
    %106 = vector.shape_cast %105 : vector<1x8x256xbf16> to vector<8x256xbf16>
    %107 = arith.extf %106 : vector<8x256xbf16> to vector<8x256xf32>
    %108 = vector.broadcast %104 : vector<1x256xf32> to vector<8x256xf32>
    %109 = arith.mulf %108, %107 : vector<8x256xf32>
    %110 = arith.addf %102, %109 : vector<8x256xf32>
    %c28 = arith.constant 28 : index
    %c0_49 = arith.constant 0 : index
    %111 = vector.load %arg2[%c28, %c0_49] : memref<72x256xbf16, #tpu.memory_space<vmem>>, vector<1x256xbf16>
    %112 = arith.extf %111 : vector<1x256xbf16> to vector<1x256xf32>
    %c14_50 = arith.constant 14 : index
    %c0_51 = arith.constant 0 : index
    %c0_52 = arith.constant 0 : index
    %113 = vector.load %arg3[%c14_50, %c0_51, %c0_52] : memref<36x8x256xbf16, #tpu.memory_space<vmem>>, vector<1x8x256xbf16>
    %114 = vector.shape_cast %113 : vector<1x8x256xbf16> to vector<8x256xbf16>
    %115 = arith.extf %114 : vector<8x256xbf16> to vector<8x256xf32>
    %116 = vector.broadcast %112 : vector<1x256xf32> to vector<8x256xf32>
    %117 = arith.mulf %116, %115 : vector<8x256xf32>
    %118 = arith.addf %110, %117 : vector<8x256xf32>
    %c30 = arith.constant 30 : index
    %c0_53 = arith.constant 0 : index
    %119 = vector.load %arg2[%c30, %c0_53] : memref<72x256xbf16, #tpu.memory_space<vmem>>, vector<1x256xbf16>
    %120 = arith.extf %119 : vector<1x256xbf16> to vector<1x256xf32>
    %c15 = arith.constant 15 : index
    %c0_54 = arith.constant 0 : index
    %c0_55 = arith.constant 0 : index
    %121 = vector.load %arg3[%c15, %c0_54, %c0_55] : memref<36x8x256xbf16, #tpu.memory_space<vmem>>, vector<1x8x256xbf16>
    %122 = vector.shape_cast %121 : vector<1x8x256xbf16> to vector<8x256xbf16>
    %123 = arith.extf %122 : vector<8x256xbf16> to vector<8x256xf32>
    %124 = vector.broadcast %120 : vector<1x256xf32> to vector<8x256xf32>
    %125 = arith.mulf %124, %123 : vector<8x256xf32>
    %126 = arith.addf %118, %125 : vector<8x256xf32>
    %c32 = arith.constant 32 : index
    %c0_56 = arith.constant 0 : index
    %127 = vector.load %arg2[%c32, %c0_56] : memref<72x256xbf16, #tpu.memory_space<vmem>>, vector<1x256xbf16>
    %128 = arith.extf %127 : vector<1x256xbf16> to vector<1x256xf32>
    %c16_57 = arith.constant 16 : index
    %c0_58 = arith.constant 0 : index
    %c0_59 = arith.constant 0 : index
    %129 = vector.load %arg3[%c16_57, %c0_58, %c0_59] : memref<36x8x256xbf16, #tpu.memory_space<vmem>>, vector<1x8x256xbf16>
    %130 = vector.shape_cast %129 : vector<1x8x256xbf16> to vector<8x256xbf16>
    %131 = arith.extf %130 : vector<8x256xbf16> to vector<8x256xf32>
    %132 = vector.broadcast %128 : vector<1x256xf32> to vector<8x256xf32>
    %133 = arith.mulf %132, %131 : vector<8x256xf32>
    %134 = arith.addf %126, %133 : vector<8x256xf32>
    %c34 = arith.constant 34 : index
    %c0_60 = arith.constant 0 : index
    %135 = vector.load %arg2[%c34, %c0_60] : memref<72x256xbf16, #tpu.memory_space<vmem>>, vector<1x256xbf16>
    %136 = arith.extf %135 : vector<1x256xbf16> to vector<1x256xf32>
    %c17 = arith.constant 17 : index
    %c0_61 = arith.constant 0 : index
    %c0_62 = arith.constant 0 : index
    %137 = vector.load %arg3[%c17, %c0_61, %c0_62] : memref<36x8x256xbf16, #tpu.memory_space<vmem>>, vector<1x8x256xbf16>
    %138 = vector.shape_cast %137 : vector<1x8x256xbf16> to vector<8x256xbf16>
    %139 = arith.extf %138 : vector<8x256xbf16> to vector<8x256xf32>
    %140 = vector.broadcast %136 : vector<1x256xf32> to vector<8x256xf32>
    %141 = arith.mulf %140, %139 : vector<8x256xf32>
    %142 = arith.addf %134, %141 : vector<8x256xf32>
    %c36 = arith.constant 36 : index
    %c0_63 = arith.constant 0 : index
    %143 = vector.load %arg2[%c36, %c0_63] : memref<72x256xbf16, #tpu.memory_space<vmem>>, vector<1x256xbf16>
    %144 = arith.extf %143 : vector<1x256xbf16> to vector<1x256xf32>
    %c18_64 = arith.constant 18 : index
    %c0_65 = arith.constant 0 : index
    %c0_66 = arith.constant 0 : index
    %145 = vector.load %arg3[%c18_64, %c0_65, %c0_66] : memref<36x8x256xbf16, #tpu.memory_space<vmem>>, vector<1x8x256xbf16>
    %146 = vector.shape_cast %145 : vector<1x8x256xbf16> to vector<8x256xbf16>
    %147 = arith.extf %146 : vector<8x256xbf16> to vector<8x256xf32>
    %148 = vector.broadcast %144 : vector<1x256xf32> to vector<8x256xf32>
    %149 = arith.mulf %148, %147 : vector<8x256xf32>
    %150 = arith.addf %142, %149 : vector<8x256xf32>
    %c38 = arith.constant 38 : index
    %c0_67 = arith.constant 0 : index
    %151 = vector.load %arg2[%c38, %c0_67] : memref<72x256xbf16, #tpu.memory_space<vmem>>, vector<1x256xbf16>
    %152 = arith.extf %151 : vector<1x256xbf16> to vector<1x256xf32>
    %c19 = arith.constant 19 : index
    %c0_68 = arith.constant 0 : index
    %c0_69 = arith.constant 0 : index
    %153 = vector.load %arg3[%c19, %c0_68, %c0_69] : memref<36x8x256xbf16, #tpu.memory_space<vmem>>, vector<1x8x256xbf16>
    %154 = vector.shape_cast %153 : vector<1x8x256xbf16> to vector<8x256xbf16>
    %155 = arith.extf %154 : vector<8x256xbf16> to vector<8x256xf32>
    %156 = vector.broadcast %152 : vector<1x256xf32> to vector<8x256xf32>
    %157 = arith.mulf %156, %155 : vector<8x256xf32>
    %158 = arith.addf %150, %157 : vector<8x256xf32>
    %c40 = arith.constant 40 : index
    %c0_70 = arith.constant 0 : index
    %159 = vector.load %arg2[%c40, %c0_70] : memref<72x256xbf16, #tpu.memory_space<vmem>>, vector<1x256xbf16>
    %160 = arith.extf %159 : vector<1x256xbf16> to vector<1x256xf32>
    %c20_71 = arith.constant 20 : index
    %c0_72 = arith.constant 0 : index
    %c0_73 = arith.constant 0 : index
    %161 = vector.load %arg3[%c20_71, %c0_72, %c0_73] : memref<36x8x256xbf16, #tpu.memory_space<vmem>>, vector<1x8x256xbf16>
    %162 = vector.shape_cast %161 : vector<1x8x256xbf16> to vector<8x256xbf16>
    %163 = arith.extf %162 : vector<8x256xbf16> to vector<8x256xf32>
    %164 = vector.broadcast %160 : vector<1x256xf32> to vector<8x256xf32>
    %165 = arith.mulf %164, %163 : vector<8x256xf32>
    %166 = arith.addf %158, %165 : vector<8x256xf32>
    %c42 = arith.constant 42 : index
    %c0_74 = arith.constant 0 : index
    %167 = vector.load %arg2[%c42, %c0_74] : memref<72x256xbf16, #tpu.memory_space<vmem>>, vector<1x256xbf16>
    %168 = arith.extf %167 : vector<1x256xbf16> to vector<1x256xf32>
    %c21 = arith.constant 21 : index
    %c0_75 = arith.constant 0 : index
    %c0_76 = arith.constant 0 : index
    %169 = vector.load %arg3[%c21, %c0_75, %c0_76] : memref<36x8x256xbf16, #tpu.memory_space<vmem>>, vector<1x8x256xbf16>
    %170 = vector.shape_cast %169 : vector<1x8x256xbf16> to vector<8x256xbf16>
    %171 = arith.extf %170 : vector<8x256xbf16> to vector<8x256xf32>
    %172 = vector.broadcast %168 : vector<1x256xf32> to vector<8x256xf32>
    %173 = arith.mulf %172, %171 : vector<8x256xf32>
    %174 = arith.addf %166, %173 : vector<8x256xf32>
    %c44 = arith.constant 44 : index
    %c0_77 = arith.constant 0 : index
    %175 = vector.load %arg2[%c44, %c0_77] : memref<72x256xbf16, #tpu.memory_space<vmem>>, vector<1x256xbf16>
    %176 = arith.extf %175 : vector<1x256xbf16> to vector<1x256xf32>
    %c22_78 = arith.constant 22 : index
    %c0_79 = arith.constant 0 : index
    %c0_80 = arith.constant 0 : index
    %177 = vector.load %arg3[%c22_78, %c0_79, %c0_80] : memref<36x8x256xbf16, #tpu.memory_space<vmem>>, vector<1x8x256xbf16>
    %178 = vector.shape_cast %177 : vector<1x8x256xbf16> to vector<8x256xbf16>
    %179 = arith.extf %178 : vector<8x256xbf16> to vector<8x256xf32>
    %180 = vector.broadcast %176 : vector<1x256xf32> to vector<8x256xf32>
    %181 = arith.mulf %180, %179 : vector<8x256xf32>
    %182 = arith.addf %174, %181 : vector<8x256xf32>
    %c46 = arith.constant 46 : index
    %c0_81 = arith.constant 0 : index
    %183 = vector.load %arg2[%c46, %c0_81] : memref<72x256xbf16, #tpu.memory_space<vmem>>, vector<1x256xbf16>
    %184 = arith.extf %183 : vector<1x256xbf16> to vector<1x256xf32>
    %c23 = arith.constant 23 : index
    %c0_82 = arith.constant 0 : index
    %c0_83 = arith.constant 0 : index
    %185 = vector.load %arg3[%c23, %c0_82, %c0_83] : memref<36x8x256xbf16, #tpu.memory_space<vmem>>, vector<1x8x256xbf16>
    %186 = vector.shape_cast %185 : vector<1x8x256xbf16> to vector<8x256xbf16>
    %187 = arith.extf %186 : vector<8x256xbf16> to vector<8x256xf32>
    %188 = vector.broadcast %184 : vector<1x256xf32> to vector<8x256xf32>
    %189 = arith.mulf %188, %187 : vector<8x256xf32>
    %190 = arith.addf %182, %189 : vector<8x256xf32>
    %c48 = arith.constant 48 : index
    %c0_84 = arith.constant 0 : index
    %191 = vector.load %arg2[%c48, %c0_84] : memref<72x256xbf16, #tpu.memory_space<vmem>>, vector<1x256xbf16>
    %192 = arith.extf %191 : vector<1x256xbf16> to vector<1x256xf32>
    %c24_85 = arith.constant 24 : index
    %c0_86 = arith.constant 0 : index
    %c0_87 = arith.constant 0 : index
    %193 = vector.load %arg3[%c24_85, %c0_86, %c0_87] : memref<36x8x256xbf16, #tpu.memory_space<vmem>>, vector<1x8x256xbf16>
    %194 = vector.shape_cast %193 : vector<1x8x256xbf16> to vector<8x256xbf16>
    %195 = arith.extf %194 : vector<8x256xbf16> to vector<8x256xf32>
    %196 = vector.broadcast %192 : vector<1x256xf32> to vector<8x256xf32>
    %197 = arith.mulf %196, %195 : vector<8x256xf32>
    %198 = arith.addf %190, %197 : vector<8x256xf32>
    %c50 = arith.constant 50 : index
    %c0_88 = arith.constant 0 : index
    %199 = vector.load %arg2[%c50, %c0_88] : memref<72x256xbf16, #tpu.memory_space<vmem>>, vector<1x256xbf16>
    %200 = arith.extf %199 : vector<1x256xbf16> to vector<1x256xf32>
    %c25 = arith.constant 25 : index
    %c0_89 = arith.constant 0 : index
    %c0_90 = arith.constant 0 : index
    %201 = vector.load %arg3[%c25, %c0_89, %c0_90] : memref<36x8x256xbf16, #tpu.memory_space<vmem>>, vector<1x8x256xbf16>
    %202 = vector.shape_cast %201 : vector<1x8x256xbf16> to vector<8x256xbf16>
    %203 = arith.extf %202 : vector<8x256xbf16> to vector<8x256xf32>
    %204 = vector.broadcast %200 : vector<1x256xf32> to vector<8x256xf32>
    %205 = arith.mulf %204, %203 : vector<8x256xf32>
    %206 = arith.addf %198, %205 : vector<8x256xf32>
    %c52 = arith.constant 52 : index
    %c0_91 = arith.constant 0 : index
    %207 = vector.load %arg2[%c52, %c0_91] : memref<72x256xbf16, #tpu.memory_space<vmem>>, vector<1x256xbf16>
    %208 = arith.extf %207 : vector<1x256xbf16> to vector<1x256xf32>
    %c26_92 = arith.constant 26 : index
    %c0_93 = arith.constant 0 : index
    %c0_94 = arith.constant 0 : index
    %209 = vector.load %arg3[%c26_92, %c0_93, %c0_94] : memref<36x8x256xbf16, #tpu.memory_space<vmem>>, vector<1x8x256xbf16>
    %210 = vector.shape_cast %209 : vector<1x8x256xbf16> to vector<8x256xbf16>
    %211 = arith.extf %210 : vector<8x256xbf16> to vector<8x256xf32>
    %212 = vector.broadcast %208 : vector<1x256xf32> to vector<8x256xf32>
    %213 = arith.mulf %212, %211 : vector<8x256xf32>
    %214 = arith.addf %206, %213 : vector<8x256xf32>
    %c54 = arith.constant 54 : index
    %c0_95 = arith.constant 0 : index
    %215 = vector.load %arg2[%c54, %c0_95] : memref<72x256xbf16, #tpu.memory_space<vmem>>, vector<1x256xbf16>
    %216 = arith.extf %215 : vector<1x256xbf16> to vector<1x256xf32>
    %c27 = arith.constant 27 : index
    %c0_96 = arith.constant 0 : index
    %c0_97 = arith.constant 0 : index
    %217 = vector.load %arg3[%c27, %c0_96, %c0_97] : memref<36x8x256xbf16, #tpu.memory_space<vmem>>, vector<1x8x256xbf16>
    %218 = vector.shape_cast %217 : vector<1x8x256xbf16> to vector<8x256xbf16>
    %219 = arith.extf %218 : vector<8x256xbf16> to vector<8x256xf32>
    %220 = vector.broadcast %216 : vector<1x256xf32> to vector<8x256xf32>
    %221 = arith.mulf %220, %219 : vector<8x256xf32>
    %222 = arith.addf %214, %221 : vector<8x256xf32>
    %c56 = arith.constant 56 : index
    %c0_98 = arith.constant 0 : index
    %223 = vector.load %arg2[%c56, %c0_98] : memref<72x256xbf16, #tpu.memory_space<vmem>>, vector<1x256xbf16>
    %224 = arith.extf %223 : vector<1x256xbf16> to vector<1x256xf32>
    %c28_99 = arith.constant 28 : index
    %c0_100 = arith.constant 0 : index
    %c0_101 = arith.constant 0 : index
    %225 = vector.load %arg3[%c28_99, %c0_100, %c0_101] : memref<36x8x256xbf16, #tpu.memory_space<vmem>>, vector<1x8x256xbf16>
    %226 = vector.shape_cast %225 : vector<1x8x256xbf16> to vector<8x256xbf16>
    %227 = arith.extf %226 : vector<8x256xbf16> to vector<8x256xf32>
    %228 = vector.broadcast %224 : vector<1x256xf32> to vector<8x256xf32>
    %229 = arith.mulf %228, %227 : vector<8x256xf32>
    %230 = arith.addf %222, %229 : vector<8x256xf32>
    %c58 = arith.constant 58 : index
    %c0_102 = arith.constant 0 : index
    %231 = vector.load %arg2[%c58, %c0_102] : memref<72x256xbf16, #tpu.memory_space<vmem>>, vector<1x256xbf16>
    %232 = arith.extf %231 : vector<1x256xbf16> to vector<1x256xf32>
    %c29 = arith.constant 29 : index
    %c0_103 = arith.constant 0 : index
    %c0_104 = arith.constant 0 : index
    %233 = vector.load %arg3[%c29, %c0_103, %c0_104] : memref<36x8x256xbf16, #tpu.memory_space<vmem>>, vector<1x8x256xbf16>
    %234 = vector.shape_cast %233 : vector<1x8x256xbf16> to vector<8x256xbf16>
    %235 = arith.extf %234 : vector<8x256xbf16> to vector<8x256xf32>
    %236 = vector.broadcast %232 : vector<1x256xf32> to vector<8x256xf32>
    %237 = arith.mulf %236, %235 : vector<8x256xf32>
    %238 = arith.addf %230, %237 : vector<8x256xf32>
    %c60 = arith.constant 60 : index
    %c0_105 = arith.constant 0 : index
    %239 = vector.load %arg2[%c60, %c0_105] : memref<72x256xbf16, #tpu.memory_space<vmem>>, vector<1x256xbf16>
    %240 = arith.extf %239 : vector<1x256xbf16> to vector<1x256xf32>
    %c30_106 = arith.constant 30 : index
    %c0_107 = arith.constant 0 : index
    %c0_108 = arith.constant 0 : index
    %241 = vector.load %arg3[%c30_106, %c0_107, %c0_108] : memref<36x8x256xbf16, #tpu.memory_space<vmem>>, vector<1x8x256xbf16>
    %242 = vector.shape_cast %241 : vector<1x8x256xbf16> to vector<8x256xbf16>
    %243 = arith.extf %242 : vector<8x256xbf16> to vector<8x256xf32>
    %244 = vector.broadcast %240 : vector<1x256xf32> to vector<8x256xf32>
    %245 = arith.mulf %244, %243 : vector<8x256xf32>
    %246 = arith.addf %238, %245 : vector<8x256xf32>
    %c62 = arith.constant 62 : index
    %c0_109 = arith.constant 0 : index
    %247 = vector.load %arg2[%c62, %c0_109] : memref<72x256xbf16, #tpu.memory_space<vmem>>, vector<1x256xbf16>
    %248 = arith.extf %247 : vector<1x256xbf16> to vector<1x256xf32>
    %c31 = arith.constant 31 : index
    %c0_110 = arith.constant 0 : index
    %c0_111 = arith.constant 0 : index
    %249 = vector.load %arg3[%c31, %c0_110, %c0_111] : memref<36x8x256xbf16, #tpu.memory_space<vmem>>, vector<1x8x256xbf16>
    %250 = vector.shape_cast %249 : vector<1x8x256xbf16> to vector<8x256xbf16>
    %251 = arith.extf %250 : vector<8x256xbf16> to vector<8x256xf32>
    %252 = vector.broadcast %248 : vector<1x256xf32> to vector<8x256xf32>
    %253 = arith.mulf %252, %251 : vector<8x256xf32>
    %254 = arith.addf %246, %253 : vector<8x256xf32>
    %c64 = arith.constant 64 : index
    %c0_112 = arith.constant 0 : index
    %255 = vector.load %arg2[%c64, %c0_112] : memref<72x256xbf16, #tpu.memory_space<vmem>>, vector<1x256xbf16>
    %256 = arith.extf %255 : vector<1x256xbf16> to vector<1x256xf32>
    %c32_113 = arith.constant 32 : index
    %c0_114 = arith.constant 0 : index
    %c0_115 = arith.constant 0 : index
    %257 = vector.load %arg3[%c32_113, %c0_114, %c0_115] : memref<36x8x256xbf16, #tpu.memory_space<vmem>>, vector<1x8x256xbf16>
    %258 = vector.shape_cast %257 : vector<1x8x256xbf16> to vector<8x256xbf16>
    %259 = arith.extf %258 : vector<8x256xbf16> to vector<8x256xf32>
    %260 = vector.broadcast %256 : vector<1x256xf32> to vector<8x256xf32>
    %261 = arith.mulf %260, %259 : vector<8x256xf32>
    %262 = arith.addf %254, %261 : vector<8x256xf32>
    %c66 = arith.constant 66 : index
    %c0_116 = arith.constant 0 : index
    %263 = vector.load %arg2[%c66, %c0_116] : memref<72x256xbf16, #tpu.memory_space<vmem>>, vector<1x256xbf16>
    %264 = arith.extf %263 : vector<1x256xbf16> to vector<1x256xf32>
    %c33 = arith.constant 33 : index
    %c0_117 = arith.constant 0 : index
    %c0_118 = arith.constant 0 : index
    %265 = vector.load %arg3[%c33, %c0_117, %c0_118] : memref<36x8x256xbf16, #tpu.memory_space<vmem>>, vector<1x8x256xbf16>
    %266 = vector.shape_cast %265 : vector<1x8x256xbf16> to vector<8x256xbf16>
    %267 = arith.extf %266 : vector<8x256xbf16> to vector<8x256xf32>
    %268 = vector.broadcast %264 : vector<1x256xf32> to vector<8x256xf32>
    %269 = arith.mulf %268, %267 : vector<8x256xf32>
    %270 = arith.addf %262, %269 : vector<8x256xf32>
    %c68 = arith.constant 68 : index
    %c0_119 = arith.constant 0 : index
    %271 = vector.load %arg2[%c68, %c0_119] : memref<72x256xbf16, #tpu.memory_space<vmem>>, vector<1x256xbf16>
    %272 = arith.extf %271 : vector<1x256xbf16> to vector<1x256xf32>
    %c34_120 = arith.constant 34 : index
    %c0_121 = arith.constant 0 : index
    %c0_122 = arith.constant 0 : index
    %273 = vector.load %arg3[%c34_120, %c0_121, %c0_122] : memref<36x8x256xbf16, #tpu.memory_space<vmem>>, vector<1x8x256xbf16>
    %274 = vector.shape_cast %273 : vector<1x8x256xbf16> to vector<8x256xbf16>
    %275 = arith.extf %274 : vector<8x256xbf16> to vector<8x256xf32>
    %276 = vector.broadcast %272 : vector<1x256xf32> to vector<8x256xf32>
    %277 = arith.mulf %276, %275 : vector<8x256xf32>
    %278 = arith.addf %270, %277 : vector<8x256xf32>
    %c70 = arith.constant 70 : index
    %c0_123 = arith.constant 0 : index
    %279 = vector.load %arg2[%c70, %c0_123] : memref<72x256xbf16, #tpu.memory_space<vmem>>, vector<1x256xbf16>
    %280 = arith.extf %279 : vector<1x256xbf16> to vector<1x256xf32>
    %c35 = arith.constant 35 : index
    %c0_124 = arith.constant 0 : index
    %c0_125 = arith.constant 0 : index
    %281 = vector.load %arg3[%c35, %c0_124, %c0_125] : memref<36x8x256xbf16, #tpu.memory_space<vmem>>, vector<1x8x256xbf16>
    %282 = vector.shape_cast %281 : vector<1x8x256xbf16> to vector<8x256xbf16>
    %283 = arith.extf %282 : vector<8x256xbf16> to vector<8x256xf32>
    %284 = vector.broadcast %280 : vector<1x256xf32> to vector<8x256xf32>
    %285 = arith.mulf %284, %283 : vector<8x256xf32>
    %286 = arith.addf %278, %285 : vector<8x256xf32>
    %c0_126 = arith.constant 0 : index
    %c0_127 = arith.constant 0 : index
    %c0_128 = arith.constant 0 : index
    %287 = vector.load %arg4[%c0_126, %c0_127, %c0_128] : memref<2x8x256xf32, #tpu.memory_space<vmem>>, vector<1x8x256xf32>
    %288 = vector.shape_cast %287 : vector<1x8x256xf32> to vector<8x256xf32>
    %289 = vector.shape_cast %286 : vector<8x256xf32> to vector<1x8x256xf32>
    tpu.vector_store %arg4[%c0_126, %c0_127, %c0_128], %289 {strides = array<i32>} : memref<2x8x256xf32, #tpu.memory_space<vmem>>, vector<1x8x256xf32>,
    %c1_129 = arith.constant 1 : index
    %c0_130 = arith.constant 0 : index
    %290 = vector.load %arg2[%c1_129, %c0_130] : memref<72x256xbf16, #tpu.memory_space<vmem>>, vector<1x256xbf16>
    %291 = arith.extf %290 : vector<1x256xbf16> to vector<1x256xf32>
    %c0_131 = arith.constant 0 : index
    %c0_132 = arith.constant 0 : index
    %c0_133 = arith.constant 0 : index
    %292 = vector.load %arg3[%c0_131, %c0_132, %c0_133] : memref<36x8x256xbf16, #tpu.memory_space<vmem>>, vector<1x8x256xbf16>
    %293 = vector.shape_cast %292 : vector<1x8x256xbf16> to vector<8x256xbf16>
    %294 = arith.extf %293 : vector<8x256xbf16> to vector<8x256xf32>
    %295 = vector.broadcast %291 : vector<1x256xf32> to vector<8x256xf32>
    %296 = arith.mulf %295, %294 : vector<8x256xf32>
    %c3_134 = arith.constant 3 : index
    %c0_135 = arith.constant 0 : index
    %297 = vector.load %arg2[%c3_134, %c0_135] : memref<72x256xbf16, #tpu.memory_space<vmem>>, vector<1x256xbf16>
    %298 = arith.extf %297 : vector<1x256xbf16> to vector<1x256xf32>
    %c1_136 = arith.constant 1 : index
    %c0_137 = arith.constant 0 : index
    %c0_138 = arith.constant 0 : index
    %299 = vector.load %arg3[%c1_136, %c0_137, %c0_138] : memref<36x8x256xbf16, #tpu.memory_space<vmem>>, vector<1x8x256xbf16>
    %300 = vector.shape_cast %299 : vector<1x8x256xbf16> to vector<8x256xbf16>
    %301 = arith.extf %300 : vector<8x256xbf16> to vector<8x256xf32>
    %302 = vector.broadcast %298 : vector<1x256xf32> to vector<8x256xf32>
    %303 = arith.mulf %302, %301 : vector<8x256xf32>
    %304 = arith.addf %296, %303 : vector<8x256xf32>
    %c5_139 = arith.constant 5 : index
    %c0_140 = arith.constant 0 : index
    %305 = vector.load %arg2[%c5_139, %c0_140] : memref<72x256xbf16, #tpu.memory_space<vmem>>, vector<1x256xbf16>
    %306 = arith.extf %305 : vector<1x256xbf16> to vector<1x256xf32>
    %c2_141 = arith.constant 2 : index
    %c0_142 = arith.constant 0 : index
    %c0_143 = arith.constant 0 : index
    %307 = vector.load %arg3[%c2_141, %c0_142, %c0_143] : memref<36x8x256xbf16, #tpu.memory_space<vmem>>, vector<1x8x256xbf16>
    %308 = vector.shape_cast %307 : vector<1x8x256xbf16> to vector<8x256xbf16>
    %309 = arith.extf %308 : vector<8x256xbf16> to vector<8x256xf32>
    %310 = vector.broadcast %306 : vector<1x256xf32> to vector<8x256xf32>
    %311 = arith.mulf %310, %309 : vector<8x256xf32>
    %312 = arith.addf %304, %311 : vector<8x256xf32>
    %c7_144 = arith.constant 7 : index
    %c0_145 = arith.constant 0 : index
    %313 = vector.load %arg2[%c7_144, %c0_145] : memref<72x256xbf16, #tpu.memory_space<vmem>>, vector<1x256xbf16>
    %314 = arith.extf %313 : vector<1x256xbf16> to vector<1x256xf32>
    %c3_146 = arith.constant 3 : index
    %c0_147 = arith.constant 0 : index
    %c0_148 = arith.constant 0 : index
    %315 = vector.load %arg3[%c3_146, %c0_147, %c0_148] : memref<36x8x256xbf16, #tpu.memory_space<vmem>>, vector<1x8x256xbf16>
    %316 = vector.shape_cast %315 : vector<1x8x256xbf16> to vector<8x256xbf16>
    %317 = arith.extf %316 : vector<8x256xbf16> to vector<8x256xf32>
    %318 = vector.broadcast %314 : vector<1x256xf32> to vector<8x256xf32>
    %319 = arith.mulf %318, %317 : vector<8x256xf32>
    %320 = arith.addf %312, %319 : vector<8x256xf32>
    %c9_149 = arith.constant 9 : index
    %c0_150 = arith.constant 0 : index
    %321 = vector.load %arg2[%c9_149, %c0_150] : memref<72x256xbf16, #tpu.memory_space<vmem>>, vector<1x256xbf16>
    %322 = arith.extf %321 : vector<1x256xbf16> to vector<1x256xf32>
    %c4_151 = arith.constant 4 : index
    %c0_152 = arith.constant 0 : index
    %c0_153 = arith.constant 0 : index
    %323 = vector.load %arg3[%c4_151, %c0_152, %c0_153] : memref<36x8x256xbf16, #tpu.memory_space<vmem>>, vector<1x8x256xbf16>
    %324 = vector.shape_cast %323 : vector<1x8x256xbf16> to vector<8x256xbf16>
    %325 = arith.extf %324 : vector<8x256xbf16> to vector<8x256xf32>
    %326 = vector.broadcast %322 : vector<1x256xf32> to vector<8x256xf32>
    %327 = arith.mulf %326, %325 : vector<8x256xf32>
    %328 = arith.addf %320, %327 : vector<8x256xf32>
    %c11_154 = arith.constant 11 : index
    %c0_155 = arith.constant 0 : index
    %329 = vector.load %arg2[%c11_154, %c0_155] : memref<72x256xbf16, #tpu.memory_space<vmem>>, vector<1x256xbf16>
    %330 = arith.extf %329 : vector<1x256xbf16> to vector<1x256xf32>
    %c5_156 = arith.constant 5 : index
    %c0_157 = arith.constant 0 : index
    %c0_158 = arith.constant 0 : index
    %331 = vector.load %arg3[%c5_156, %c0_157, %c0_158] : memref<36x8x256xbf16, #tpu.memory_space<vmem>>, vector<1x8x256xbf16>
    %332 = vector.shape_cast %331 : vector<1x8x256xbf16> to vector<8x256xbf16>
    %333 = arith.extf %332 : vector<8x256xbf16> to vector<8x256xf32>
    %334 = vector.broadcast %330 : vector<1x256xf32> to vector<8x256xf32>
    %335 = arith.mulf %334, %333 : vector<8x256xf32>
    %336 = arith.addf %328, %335 : vector<8x256xf32>
    %c13_159 = arith.constant 13 : index
    %c0_160 = arith.constant 0 : index
    %337 = vector.load %arg2[%c13_159, %c0_160] : memref<72x256xbf16, #tpu.memory_space<vmem>>, vector<1x256xbf16>
    %338 = arith.extf %337 : vector<1x256xbf16> to vector<1x256xf32>
    %c6_161 = arith.constant 6 : index
    %c0_162 = arith.constant 0 : index
    %c0_163 = arith.constant 0 : index
    %339 = vector.load %arg3[%c6_161, %c0_162, %c0_163] : memref<36x8x256xbf16, #tpu.memory_space<vmem>>, vector<1x8x256xbf16>
    %340 = vector.shape_cast %339 : vector<1x8x256xbf16> to vector<8x256xbf16>
    %341 = arith.extf %340 : vector<8x256xbf16> to vector<8x256xf32>
    %342 = vector.broadcast %338 : vector<1x256xf32> to vector<8x256xf32>
    %343 = arith.mulf %342, %341 : vector<8x256xf32>
    %344 = arith.addf %336, %343 : vector<8x256xf32>
    %c15_164 = arith.constant 15 : index
    %c0_165 = arith.constant 0 : index
    %345 = vector.load %arg2[%c15_164, %c0_165] : memref<72x256xbf16, #tpu.memory_space<vmem>>, vector<1x256xbf16>
    %346 = arith.extf %345 : vector<1x256xbf16> to vector<1x256xf32>
    %c7_166 = arith.constant 7 : index
    %c0_167 = arith.constant 0 : index
    %c0_168 = arith.constant 0 : index
    %347 = vector.load %arg3[%c7_166, %c0_167, %c0_168] : memref<36x8x256xbf16, #tpu.memory_space<vmem>>, vector<1x8x256xbf16>
    %348 = vector.shape_cast %347 : vector<1x8x256xbf16> to vector<8x256xbf16>
    %349 = arith.extf %348 : vector<8x256xbf16> to vector<8x256xf32>
    %350 = vector.broadcast %346 : vector<1x256xf32> to vector<8x256xf32>
    %351 = arith.mulf %350, %349 : vector<8x256xf32>
    %352 = arith.addf %344, %351 : vector<8x256xf32>
    %c17_169 = arith.constant 17 : index
    %c0_170 = arith.constant 0 : index
    %353 = vector.load %arg2[%c17_169, %c0_170] : memref<72x256xbf16, #tpu.memory_space<vmem>>, vector<1x256xbf16>
    %354 = arith.extf %353 : vector<1x256xbf16> to vector<1x256xf32>
    %c8_171 = arith.constant 8 : index
    %c0_172 = arith.constant 0 : index
    %c0_173 = arith.constant 0 : index
    %355 = vector.load %arg3[%c8_171, %c0_172, %c0_173] : memref<36x8x256xbf16, #tpu.memory_space<vmem>>, vector<1x8x256xbf16>
    %356 = vector.shape_cast %355 : vector<1x8x256xbf16> to vector<8x256xbf16>
    %357 = arith.extf %356 : vector<8x256xbf16> to vector<8x256xf32>
    %358 = vector.broadcast %354 : vector<1x256xf32> to vector<8x256xf32>
    %359 = arith.mulf %358, %357 : vector<8x256xf32>
    %360 = arith.addf %352, %359 : vector<8x256xf32>
    %c19_174 = arith.constant 19 : index
    %c0_175 = arith.constant 0 : index
    %361 = vector.load %arg2[%c19_174, %c0_175] : memref<72x256xbf16, #tpu.memory_space<vmem>>, vector<1x256xbf16>
    %362 = arith.extf %361 : vector<1x256xbf16> to vector<1x256xf32>
    %c9_176 = arith.constant 9 : index
    %c0_177 = arith.constant 0 : index
    %c0_178 = arith.constant 0 : index
    %363 = vector.load %arg3[%c9_176, %c0_177, %c0_178] : memref<36x8x256xbf16, #tpu.memory_space<vmem>>, vector<1x8x256xbf16>
    %364 = vector.shape_cast %363 : vector<1x8x256xbf16> to vector<8x256xbf16>
    %365 = arith.extf %364 : vector<8x256xbf16> to vector<8x256xf32>
    %366 = vector.broadcast %362 : vector<1x256xf32> to vector<8x256xf32>
    %367 = arith.mulf %366, %365 : vector<8x256xf32>
    %368 = arith.addf %360, %367 : vector<8x256xf32>
    %c21_179 = arith.constant 21 : index
    %c0_180 = arith.constant 0 : index
    %369 = vector.load %arg2[%c21_179, %c0_180] : memref<72x256xbf16, #tpu.memory_space<vmem>>, vector<1x256xbf16>
    %370 = arith.extf %369 : vector<1x256xbf16> to vector<1x256xf32>
    %c10_181 = arith.constant 10 : index
    %c0_182 = arith.constant 0 : index
    %c0_183 = arith.constant 0 : index
    %371 = vector.load %arg3[%c10_181, %c0_182, %c0_183] : memref<36x8x256xbf16, #tpu.memory_space<vmem>>, vector<1x8x256xbf16>
    %372 = vector.shape_cast %371 : vector<1x8x256xbf16> to vector<8x256xbf16>
    %373 = arith.extf %372 : vector<8x256xbf16> to vector<8x256xf32>
    %374 = vector.broadcast %370 : vector<1x256xf32> to vector<8x256xf32>
    %375 = arith.mulf %374, %373 : vector<8x256xf32>
    %376 = arith.addf %368, %375 : vector<8x256xf32>
    %c23_184 = arith.constant 23 : index
    %c0_185 = arith.constant 0 : index
    %377 = vector.load %arg2[%c23_184, %c0_185] : memref<72x256xbf16, #tpu.memory_space<vmem>>, vector<1x256xbf16>
    %378 = arith.extf %377 : vector<1x256xbf16> to vector<1x256xf32>
    %c11_186 = arith.constant 11 : index
    %c0_187 = arith.constant 0 : index
    %c0_188 = arith.constant 0 : index
    %379 = vector.load %arg3[%c11_186, %c0_187, %c0_188] : memref<36x8x256xbf16, #tpu.memory_space<vmem>>, vector<1x8x256xbf16>
    %380 = vector.shape_cast %379 : vector<1x8x256xbf16> to vector<8x256xbf16>
    %381 = arith.extf %380 : vector<8x256xbf16> to vector<8x256xf32>
    %382 = vector.broadcast %378 : vector<1x256xf32> to vector<8x256xf32>
    %383 = arith.mulf %382, %381 : vector<8x256xf32>
    %384 = arith.addf %376, %383 : vector<8x256xf32>
    %c25_189 = arith.constant 25 : index
    %c0_190 = arith.constant 0 : index
    %385 = vector.load %arg2[%c25_189, %c0_190] : memref<72x256xbf16, #tpu.memory_space<vmem>>, vector<1x256xbf16>
    %386 = arith.extf %385 : vector<1x256xbf16> to vector<1x256xf32>
    %c12_191 = arith.constant 12 : index
    %c0_192 = arith.constant 0 : index
    %c0_193 = arith.constant 0 : index
    %387 = vector.load %arg3[%c12_191, %c0_192, %c0_193] : memref<36x8x256xbf16, #tpu.memory_space<vmem>>, vector<1x8x256xbf16>
    %388 = vector.shape_cast %387 : vector<1x8x256xbf16> to vector<8x256xbf16>
    %389 = arith.extf %388 : vector<8x256xbf16> to vector<8x256xf32>
    %390 = vector.broadcast %386 : vector<1x256xf32> to vector<8x256xf32>
    %391 = arith.mulf %390, %389 : vector<8x256xf32>
    %392 = arith.addf %384, %391 : vector<8x256xf32>
    %c27_194 = arith.constant 27 : index
    %c0_195 = arith.constant 0 : index
    %393 = vector.load %arg2[%c27_194, %c0_195] : memref<72x256xbf16, #tpu.memory_space<vmem>>, vector<1x256xbf16>
    %394 = arith.extf %393 : vector<1x256xbf16> to vector<1x256xf32>
    %c13_196 = arith.constant 13 : index
    %c0_197 = arith.constant 0 : index
    %c0_198 = arith.constant 0 : index
    %395 = vector.load %arg3[%c13_196, %c0_197, %c0_198] : memref<36x8x256xbf16, #tpu.memory_space<vmem>>, vector<1x8x256xbf16>
    %396 = vector.shape_cast %395 : vector<1x8x256xbf16> to vector<8x256xbf16>
    %397 = arith.extf %396 : vector<8x256xbf16> to vector<8x256xf32>
    %398 = vector.broadcast %394 : vector<1x256xf32> to vector<8x256xf32>
    %399 = arith.mulf %398, %397 : vector<8x256xf32>
    %400 = arith.addf %392, %399 : vector<8x256xf32>
    %c29_199 = arith.constant 29 : index
    %c0_200 = arith.constant 0 : index
    %401 = vector.load %arg2[%c29_199, %c0_200] : memref<72x256xbf16, #tpu.memory_space<vmem>>, vector<1x256xbf16>
    %402 = arith.extf %401 : vector<1x256xbf16> to vector<1x256xf32>
    %c14_201 = arith.constant 14 : index
    %c0_202 = arith.constant 0 : index
    %c0_203 = arith.constant 0 : index
    %403 = vector.load %arg3[%c14_201, %c0_202, %c0_203] : memref<36x8x256xbf16, #tpu.memory_space<vmem>>, vector<1x8x256xbf16>
    %404 = vector.shape_cast %403 : vector<1x8x256xbf16> to vector<8x256xbf16>
    %405 = arith.extf %404 : vector<8x256xbf16> to vector<8x256xf32>
    %406 = vector.broadcast %402 : vector<1x256xf32> to vector<8x256xf32>
    %407 = arith.mulf %406, %405 : vector<8x256xf32>
    %408 = arith.addf %400, %407 : vector<8x256xf32>
    %c31_204 = arith.constant 31 : index
    %c0_205 = arith.constant 0 : index
    %409 = vector.load %arg2[%c31_204, %c0_205] : memref<72x256xbf16, #tpu.memory_space<vmem>>, vector<1x256xbf16>
    %410 = arith.extf %409 : vector<1x256xbf16> to vector<1x256xf32>
    %c15_206 = arith.constant 15 : index
    %c0_207 = arith.constant 0 : index
    %c0_208 = arith.constant 0 : index
    %411 = vector.load %arg3[%c15_206, %c0_207, %c0_208] : memref<36x8x256xbf16, #tpu.memory_space<vmem>>, vector<1x8x256xbf16>
    %412 = vector.shape_cast %411 : vector<1x8x256xbf16> to vector<8x256xbf16>
    %413 = arith.extf %412 : vector<8x256xbf16> to vector<8x256xf32>
    %414 = vector.broadcast %410 : vector<1x256xf32> to vector<8x256xf32>
    %415 = arith.mulf %414, %413 : vector<8x256xf32>
    %416 = arith.addf %408, %415 : vector<8x256xf32>
    %c33_209 = arith.constant 33 : index
    %c0_210 = arith.constant 0 : index
    %417 = vector.load %arg2[%c33_209, %c0_210] : memref<72x256xbf16, #tpu.memory_space<vmem>>, vector<1x256xbf16>
    %418 = arith.extf %417 : vector<1x256xbf16> to vector<1x256xf32>
    %c16_211 = arith.constant 16 : index
    %c0_212 = arith.constant 0 : index
    %c0_213 = arith.constant 0 : index
    %419 = vector.load %arg3[%c16_211, %c0_212, %c0_213] : memref<36x8x256xbf16, #tpu.memory_space<vmem>>, vector<1x8x256xbf16>
    %420 = vector.shape_cast %419 : vector<1x8x256xbf16> to vector<8x256xbf16>
    %421 = arith.extf %420 : vector<8x256xbf16> to vector<8x256xf32>
    %422 = vector.broadcast %418 : vector<1x256xf32> to vector<8x256xf32>
    %423 = arith.mulf %422, %421 : vector<8x256xf32>
    %424 = arith.addf %416, %423 : vector<8x256xf32>
    %c35_214 = arith.constant 35 : index
    %c0_215 = arith.constant 0 : index
    %425 = vector.load %arg2[%c35_214, %c0_215] : memref<72x256xbf16, #tpu.memory_space<vmem>>, vector<1x256xbf16>
    %426 = arith.extf %425 : vector<1x256xbf16> to vector<1x256xf32>
    %c17_216 = arith.constant 17 : index
    %c0_217 = arith.constant 0 : index
    %c0_218 = arith.constant 0 : index
    %427 = vector.load %arg3[%c17_216, %c0_217, %c0_218] : memref<36x8x256xbf16, #tpu.memory_space<vmem>>, vector<1x8x256xbf16>
    %428 = vector.shape_cast %427 : vector<1x8x256xbf16> to vector<8x256xbf16>
    %429 = arith.extf %428 : vector<8x256xbf16> to vector<8x256xf32>
    %430 = vector.broadcast %426 : vector<1x256xf32> to vector<8x256xf32>
    %431 = arith.mulf %430, %429 : vector<8x256xf32>
    %432 = arith.addf %424, %431 : vector<8x256xf32>
    %c37 = arith.constant 37 : index
    %c0_219 = arith.constant 0 : index
    %433 = vector.load %arg2[%c37, %c0_219] : memref<72x256xbf16, #tpu.memory_space<vmem>>, vector<1x256xbf16>
    %434 = arith.extf %433 : vector<1x256xbf16> to vector<1x256xf32>
    %c18_220 = arith.constant 18 : index
    %c0_221 = arith.constant 0 : index
    %c0_222 = arith.constant 0 : index
    %435 = vector.load %arg3[%c18_220, %c0_221, %c0_222] : memref<36x8x256xbf16, #tpu.memory_space<vmem>>, vector<1x8x256xbf16>
    %436 = vector.shape_cast %435 : vector<1x8x256xbf16> to vector<8x256xbf16>
    %437 = arith.extf %436 : vector<8x256xbf16> to vector<8x256xf32>
    %438 = vector.broadcast %434 : vector<1x256xf32> to vector<8x256xf32>
    %439 = arith.mulf %438, %437 : vector<8x256xf32>
    %440 = arith.addf %432, %439 : vector<8x256xf32>
    %c39 = arith.constant 39 : index
    %c0_223 = arith.constant 0 : index
    %441 = vector.load %arg2[%c39, %c0_223] : memref<72x256xbf16, #tpu.memory_space<vmem>>, vector<1x256xbf16>
    %442 = arith.extf %441 : vector<1x256xbf16> to vector<1x256xf32>
    %c19_224 = arith.constant 19 : index
    %c0_225 = arith.constant 0 : index
    %c0_226 = arith.constant 0 : index
    %443 = vector.load %arg3[%c19_224, %c0_225, %c0_226] : memref<36x8x256xbf16, #tpu.memory_space<vmem>>, vector<1x8x256xbf16>
    %444 = vector.shape_cast %443 : vector<1x8x256xbf16> to vector<8x256xbf16>
    %445 = arith.extf %444 : vector<8x256xbf16> to vector<8x256xf32>
    %446 = vector.broadcast %442 : vector<1x256xf32> to vector<8x256xf32>
    %447 = arith.mulf %446, %445 : vector<8x256xf32>
    %448 = arith.addf %440, %447 : vector<8x256xf32>
    %c41 = arith.constant 41 : index
    %c0_227 = arith.constant 0 : index
    %449 = vector.load %arg2[%c41, %c0_227] : memref<72x256xbf16, #tpu.memory_space<vmem>>, vector<1x256xbf16>
    %450 = arith.extf %449 : vector<1x256xbf16> to vector<1x256xf32>
    %c20_228 = arith.constant 20 : index
    %c0_229 = arith.constant 0 : index
    %c0_230 = arith.constant 0 : index
    %451 = vector.load %arg3[%c20_228, %c0_229, %c0_230] : memref<36x8x256xbf16, #tpu.memory_space<vmem>>, vector<1x8x256xbf16>
    %452 = vector.shape_cast %451 : vector<1x8x256xbf16> to vector<8x256xbf16>
    %453 = arith.extf %452 : vector<8x256xbf16> to vector<8x256xf32>
    %454 = vector.broadcast %450 : vector<1x256xf32> to vector<8x256xf32>
    %455 = arith.mulf %454, %453 : vector<8x256xf32>
    %456 = arith.addf %448, %455 : vector<8x256xf32>
    %c43 = arith.constant 43 : index
    %c0_231 = arith.constant 0 : index
    %457 = vector.load %arg2[%c43, %c0_231] : memref<72x256xbf16, #tpu.memory_space<vmem>>, vector<1x256xbf16>
    %458 = arith.extf %457 : vector<1x256xbf16> to vector<1x256xf32>
    %c21_232 = arith.constant 21 : index
    %c0_233 = arith.constant 0 : index
    %c0_234 = arith.constant 0 : index
    %459 = vector.load %arg3[%c21_232, %c0_233, %c0_234] : memref<36x8x256xbf16, #tpu.memory_space<vmem>>, vector<1x8x256xbf16>
    %460 = vector.shape_cast %459 : vector<1x8x256xbf16> to vector<8x256xbf16>
    %461 = arith.extf %460 : vector<8x256xbf16> to vector<8x256xf32>
    %462 = vector.broadcast %458 : vector<1x256xf32> to vector<8x256xf32>
    %463 = arith.mulf %462, %461 : vector<8x256xf32>
    %464 = arith.addf %456, %463 : vector<8x256xf32>
    %c45 = arith.constant 45 : index
    %c0_235 = arith.constant 0 : index
    %465 = vector.load %arg2[%c45, %c0_235] : memref<72x256xbf16, #tpu.memory_space<vmem>>, vector<1x256xbf16>
    %466 = arith.extf %465 : vector<1x256xbf16> to vector<1x256xf32>
    %c22_236 = arith.constant 22 : index
    %c0_237 = arith.constant 0 : index
    %c0_238 = arith.constant 0 : index
    %467 = vector.load %arg3[%c22_236, %c0_237, %c0_238] : memref<36x8x256xbf16, #tpu.memory_space<vmem>>, vector<1x8x256xbf16>
    %468 = vector.shape_cast %467 : vector<1x8x256xbf16> to vector<8x256xbf16>
    %469 = arith.extf %468 : vector<8x256xbf16> to vector<8x256xf32>
    %470 = vector.broadcast %466 : vector<1x256xf32> to vector<8x256xf32>
    %471 = arith.mulf %470, %469 : vector<8x256xf32>
    %472 = arith.addf %464, %471 : vector<8x256xf32>
    %c47 = arith.constant 47 : index
    %c0_239 = arith.constant 0 : index
    %473 = vector.load %arg2[%c47, %c0_239] : memref<72x256xbf16, #tpu.memory_space<vmem>>, vector<1x256xbf16>
    %474 = arith.extf %473 : vector<1x256xbf16> to vector<1x256xf32>
    %c23_240 = arith.constant 23 : index
    %c0_241 = arith.constant 0 : index
    %c0_242 = arith.constant 0 : index
    %475 = vector.load %arg3[%c23_240, %c0_241, %c0_242] : memref<36x8x256xbf16, #tpu.memory_space<vmem>>, vector<1x8x256xbf16>
    %476 = vector.shape_cast %475 : vector<1x8x256xbf16> to vector<8x256xbf16>
    %477 = arith.extf %476 : vector<8x256xbf16> to vector<8x256xf32>
    %478 = vector.broadcast %474 : vector<1x256xf32> to vector<8x256xf32>
    %479 = arith.mulf %478, %477 : vector<8x256xf32>
    %480 = arith.addf %472, %479 : vector<8x256xf32>
    %c49 = arith.constant 49 : index
    %c0_243 = arith.constant 0 : index
    %481 = vector.load %arg2[%c49, %c0_243] : memref<72x256xbf16, #tpu.memory_space<vmem>>, vector<1x256xbf16>
    %482 = arith.extf %481 : vector<1x256xbf16> to vector<1x256xf32>
    %c24_244 = arith.constant 24 : index
    %c0_245 = arith.constant 0 : index
    %c0_246 = arith.constant 0 : index
    %483 = vector.load %arg3[%c24_244, %c0_245, %c0_246] : memref<36x8x256xbf16, #tpu.memory_space<vmem>>, vector<1x8x256xbf16>
    %484 = vector.shape_cast %483 : vector<1x8x256xbf16> to vector<8x256xbf16>
    %485 = arith.extf %484 : vector<8x256xbf16> to vector<8x256xf32>
    %486 = vector.broadcast %482 : vector<1x256xf32> to vector<8x256xf32>
    %487 = arith.mulf %486, %485 : vector<8x256xf32>
    %488 = arith.addf %480, %487 : vector<8x256xf32>
    %c51 = arith.constant 51 : index
    %c0_247 = arith.constant 0 : index
    %489 = vector.load %arg2[%c51, %c0_247] : memref<72x256xbf16, #tpu.memory_space<vmem>>, vector<1x256xbf16>
    %490 = arith.extf %489 : vector<1x256xbf16> to vector<1x256xf32>
    %c25_248 = arith.constant 25 : index
    %c0_249 = arith.constant 0 : index
    %c0_250 = arith.constant 0 : index
    %491 = vector.load %arg3[%c25_248, %c0_249, %c0_250] : memref<36x8x256xbf16, #tpu.memory_space<vmem>>, vector<1x8x256xbf16>
    %492 = vector.shape_cast %491 : vector<1x8x256xbf16> to vector<8x256xbf16>
    %493 = arith.extf %492 : vector<8x256xbf16> to vector<8x256xf32>
    %494 = vector.broadcast %490 : vector<1x256xf32> to vector<8x256xf32>
    %495 = arith.mulf %494, %493 : vector<8x256xf32>
    %496 = arith.addf %488, %495 : vector<8x256xf32>
    %c53 = arith.constant 53 : index
    %c0_251 = arith.constant 0 : index
    %497 = vector.load %arg2[%c53, %c0_251] : memref<72x256xbf16, #tpu.memory_space<vmem>>, vector<1x256xbf16>
    %498 = arith.extf %497 : vector<1x256xbf16> to vector<1x256xf32>
    %c26_252 = arith.constant 26 : index
    %c0_253 = arith.constant 0 : index
    %c0_254 = arith.constant 0 : index
    %499 = vector.load %arg3[%c26_252, %c0_253, %c0_254] : memref<36x8x256xbf16, #tpu.memory_space<vmem>>, vector<1x8x256xbf16>
    %500 = vector.shape_cast %499 : vector<1x8x256xbf16> to vector<8x256xbf16>
    %501 = arith.extf %500 : vector<8x256xbf16> to vector<8x256xf32>
    %502 = vector.broadcast %498 : vector<1x256xf32> to vector<8x256xf32>
    %503 = arith.mulf %502, %501 : vector<8x256xf32>
    %504 = arith.addf %496, %503 : vector<8x256xf32>
    %c55 = arith.constant 55 : index
    %c0_255 = arith.constant 0 : index
    %505 = vector.load %arg2[%c55, %c0_255] : memref<72x256xbf16, #tpu.memory_space<vmem>>, vector<1x256xbf16>
    %506 = arith.extf %505 : vector<1x256xbf16> to vector<1x256xf32>
    %c27_256 = arith.constant 27 : index
    %c0_257 = arith.constant 0 : index
    %c0_258 = arith.constant 0 : index
    %507 = vector.load %arg3[%c27_256, %c0_257, %c0_258] : memref<36x8x256xbf16, #tpu.memory_space<vmem>>, vector<1x8x256xbf16>
    %508 = vector.shape_cast %507 : vector<1x8x256xbf16> to vector<8x256xbf16>
    %509 = arith.extf %508 : vector<8x256xbf16> to vector<8x256xf32>
    %510 = vector.broadcast %506 : vector<1x256xf32> to vector<8x256xf32>
    %511 = arith.mulf %510, %509 : vector<8x256xf32>
    %512 = arith.addf %504, %511 : vector<8x256xf32>
    %c57 = arith.constant 57 : index
    %c0_259 = arith.constant 0 : index
    %513 = vector.load %arg2[%c57, %c0_259] : memref<72x256xbf16, #tpu.memory_space<vmem>>, vector<1x256xbf16>
    %514 = arith.extf %513 : vector<1x256xbf16> to vector<1x256xf32>
    %c28_260 = arith.constant 28 : index
    %c0_261 = arith.constant 0 : index
    %c0_262 = arith.constant 0 : index
    %515 = vector.load %arg3[%c28_260, %c0_261, %c0_262] : memref<36x8x256xbf16, #tpu.memory_space<vmem>>, vector<1x8x256xbf16>
    %516 = vector.shape_cast %515 : vector<1x8x256xbf16> to vector<8x256xbf16>
    %517 = arith.extf %516 : vector<8x256xbf16> to vector<8x256xf32>
    %518 = vector.broadcast %514 : vector<1x256xf32> to vector<8x256xf32>
    %519 = arith.mulf %518, %517 : vector<8x256xf32>
    %520 = arith.addf %512, %519 : vector<8x256xf32>
    %c59 = arith.constant 59 : index
    %c0_263 = arith.constant 0 : index
    %521 = vector.load %arg2[%c59, %c0_263] : memref<72x256xbf16, #tpu.memory_space<vmem>>, vector<1x256xbf16>
    %522 = arith.extf %521 : vector<1x256xbf16> to vector<1x256xf32>
    %c29_264 = arith.constant 29 : index
    %c0_265 = arith.constant 0 : index
    %c0_266 = arith.constant 0 : index
    %523 = vector.load %arg3[%c29_264, %c0_265, %c0_266] : memref<36x8x256xbf16, #tpu.memory_space<vmem>>, vector<1x8x256xbf16>
    %524 = vector.shape_cast %523 : vector<1x8x256xbf16> to vector<8x256xbf16>
    %525 = arith.extf %524 : vector<8x256xbf16> to vector<8x256xf32>
    %526 = vector.broadcast %522 : vector<1x256xf32> to vector<8x256xf32>
    %527 = arith.mulf %526, %525 : vector<8x256xf32>
    %528 = arith.addf %520, %527 : vector<8x256xf32>
    %c61 = arith.constant 61 : index
    %c0_267 = arith.constant 0 : index
    %529 = vector.load %arg2[%c61, %c0_267] : memref<72x256xbf16, #tpu.memory_space<vmem>>, vector<1x256xbf16>
    %530 = arith.extf %529 : vector<1x256xbf16> to vector<1x256xf32>
    %c30_268 = arith.constant 30 : index
    %c0_269 = arith.constant 0 : index
    %c0_270 = arith.constant 0 : index
    %531 = vector.load %arg3[%c30_268, %c0_269, %c0_270] : memref<36x8x256xbf16, #tpu.memory_space<vmem>>, vector<1x8x256xbf16>
    %532 = vector.shape_cast %531 : vector<1x8x256xbf16> to vector<8x256xbf16>
    %533 = arith.extf %532 : vector<8x256xbf16> to vector<8x256xf32>
    %534 = vector.broadcast %530 : vector<1x256xf32> to vector<8x256xf32>
    %535 = arith.mulf %534, %533 : vector<8x256xf32>
    %536 = arith.addf %528, %535 : vector<8x256xf32>
    %c63 = arith.constant 63 : index
    %c0_271 = arith.constant 0 : index
    %537 = vector.load %arg2[%c63, %c0_271] : memref<72x256xbf16, #tpu.memory_space<vmem>>, vector<1x256xbf16>
    %538 = arith.extf %537 : vector<1x256xbf16> to vector<1x256xf32>
    %c31_272 = arith.constant 31 : index
    %c0_273 = arith.constant 0 : index
    %c0_274 = arith.constant 0 : index
    %539 = vector.load %arg3[%c31_272, %c0_273, %c0_274] : memref<36x8x256xbf16, #tpu.memory_space<vmem>>, vector<1x8x256xbf16>
    %540 = vector.shape_cast %539 : vector<1x8x256xbf16> to vector<8x256xbf16>
    %541 = arith.extf %540 : vector<8x256xbf16> to vector<8x256xf32>
    %542 = vector.broadcast %538 : vector<1x256xf32> to vector<8x256xf32>
    %543 = arith.mulf %542, %541 : vector<8x256xf32>
    %544 = arith.addf %536, %543 : vector<8x256xf32>
    %c65 = arith.constant 65 : index
    %c0_275 = arith.constant 0 : index
    %545 = vector.load %arg2[%c65, %c0_275] : memref<72x256xbf16, #tpu.memory_space<vmem>>, vector<1x256xbf16>
    %546 = arith.extf %545 : vector<1x256xbf16> to vector<1x256xf32>
    %c32_276 = arith.constant 32 : index
    %c0_277 = arith.constant 0 : index
    %c0_278 = arith.constant 0 : index
    %547 = vector.load %arg3[%c32_276, %c0_277, %c0_278] : memref<36x8x256xbf16, #tpu.memory_space<vmem>>, vector<1x8x256xbf16>
    %548 = vector.shape_cast %547 : vector<1x8x256xbf16> to vector<8x256xbf16>
    %549 = arith.extf %548 : vector<8x256xbf16> to vector<8x256xf32>
    %550 = vector.broadcast %546 : vector<1x256xf32> to vector<8x256xf32>
    %551 = arith.mulf %550, %549 : vector<8x256xf32>
    %552 = arith.addf %544, %551 : vector<8x256xf32>
    %c67 = arith.constant 67 : index
    %c0_279 = arith.constant 0 : index
    %553 = vector.load %arg2[%c67, %c0_279] : memref<72x256xbf16, #tpu.memory_space<vmem>>, vector<1x256xbf16>
    %554 = arith.extf %553 : vector<1x256xbf16> to vector<1x256xf32>
    %c33_280 = arith.constant 33 : index
    %c0_281 = arith.constant 0 : index
    %c0_282 = arith.constant 0 : index
    %555 = vector.load %arg3[%c33_280, %c0_281, %c0_282] : memref<36x8x256xbf16, #tpu.memory_space<vmem>>, vector<1x8x256xbf16>
    %556 = vector.shape_cast %555 : vector<1x8x256xbf16> to vector<8x256xbf16>
    %557 = arith.extf %556 : vector<8x256xbf16> to vector<8x256xf32>
    %558 = vector.broadcast %554 : vector<1x256xf32> to vector<8x256xf32>
    %559 = arith.mulf %558, %557 : vector<8x256xf32>
    %560 = arith.addf %552, %559 : vector<8x256xf32>
    %c69 = arith.constant 69 : index
    %c0_283 = arith.constant 0 : index
    %561 = vector.load %arg2[%c69, %c0_283] : memref<72x256xbf16, #tpu.memory_space<vmem>>, vector<1x256xbf16>
    %562 = arith.extf %561 : vector<1x256xbf16> to vector<1x256xf32>
    %c34_284 = arith.constant 34 : index
    %c0_285 = arith.constant 0 : index
    %c0_286 = arith.constant 0 : index
    %563 = vector.load %arg3[%c34_284, %c0_285, %c0_286] : memref<36x8x256xbf16, #tpu.memory_space<vmem>>, vector<1x8x256xbf16>
    %564 = vector.shape_cast %563 : vector<1x8x256xbf16> to vector<8x256xbf16>
    %565 = arith.extf %564 : vector<8x256xbf16> to vector<8x256xf32>
    %566 = vector.broadcast %562 : vector<1x256xf32> to vector<8x256xf32>
    %567 = arith.mulf %566, %565 : vector<8x256xf32>
    %568 = arith.addf %560, %567 : vector<8x256xf32>
    %c71 = arith.constant 71 : index
    %c0_287 = arith.constant 0 : index
    %569 = vector.load %arg2[%c71, %c0_287] : memref<72x256xbf16, #tpu.memory_space<vmem>>, vector<1x256xbf16>
    %570 = arith.extf %569 : vector<1x256xbf16> to vector<1x256xf32>
    %c35_288 = arith.constant 35 : index
    %c0_289 = arith.constant 0 : index
    %c0_290 = arith.constant 0 : index
    %571 = vector.load %arg3[%c35_288, %c0_289, %c0_290] : memref<36x8x256xbf16, #tpu.memory_space<vmem>>, vector<1x8x256xbf16>
    %572 = vector.shape_cast %571 : vector<1x8x256xbf16> to vector<8x256xbf16>
    %573 = arith.extf %572 : vector<8x256xbf16> to vector<8x256xf32>
    %574 = vector.broadcast %570 : vector<1x256xf32> to vector<8x256xf32>
    %575 = arith.mulf %574, %573 : vector<8x256xf32>
    %576 = arith.addf %568, %575 : vector<8x256xf32>
    %c1_291 = arith.constant 1 : index
    %c0_292 = arith.constant 0 : index
    %c0_293 = arith.constant 0 : index
    %577 = vector.load %arg4[%c1_291, %c0_292, %c0_293] : memref<2x8x256xf32, #tpu.memory_space<vmem>>, vector<1x8x256xf32>
    %578 = vector.shape_cast %577 : vector<1x8x256xf32> to vector<8x256xf32>
    %579 = vector.shape_cast %576 : vector<8x256xf32> to vector<1x8x256xf32>
    tpu.vector_store %arg4[%c1_291, %c0_292, %c0_293], %579 {strides = array<i32>} : memref<2x8x256xf32, #tpu.memory_space<vmem>>, vector<1x8x256xf32>,
    return
  }
  func.func @transform_0(%arg0: i32, %arg1: i32) -> (i32, i32) {
    %c0_i32 = arith.constant 0 : i32
    %c0_i32_0 = arith.constant 0 : i32
    return %c0_i32, %arg0 : i32, i32
  }
  func.func @transform_1(%arg0: i32, %arg1: i32) -> (i32, i32, i32) {
    %c0_i32 = arith.constant 0 : i32
    %c0_i32_0 = arith.constant 0 : i32
    return %c0_i32, %arg1, %arg0 : i32, i32, i32
  }
  func.func @transform_2(%arg0: i32, %arg1: i32) -> (i32, i32, i32) {
    %c0_i32 = arith.constant 0 : i32
    %c0_i32_0 = arith.constant 0 : i32
    return %c0_i32, %arg1, %arg0 : i32, i32, i32
  }
}

</mosaic_0001>

<llo_original>
// kernel: forward.1
$region0: #{forward.1}
  #allocation0 [shape = 'u32[]', space=smem, size = 0x4, offset = 0x4, fixed_abs, tag = 'smem constant byte address 0x4 - core index']
  #allocation1 [shape = 'u32[144,128]{1,0:T(1,128)}', space=vmem, size = 0x12000, scoped, tag = 'internal scratch']
  %s0 = inlined_call_operand.vmem [shape: bf16[72,256], index: 0, kind: input, shape index: {}]
  %s1 = inlined_call_operand.vmem [shape: bf16[36,8,256], index: 1, kind: input, shape index: {}]
  %s2 = inlined_call_operand.vmem [shape: f32[2,8,256], index: 2, kind: output, shape index: {}]
  %s3 = sld [smem:[#allocation0]]
  $region18: #{forward.1} parent=0
    _
  %s5 = ssub.s32 1, %s3
  %s6 = scalar_select 0, %s5, %s3
  // Predicated region
  $region2: #{forward.1} parent=0 // pred_check
    _
  $region3: #{forward.1} parent=0 // pred_check_branch
    %8 = sbr.rel (0) target = $region5
  $region4: #{forward.1} parent=0 // pred_region
    _
  $region5: #{forward.1} parent=0 // pred_fallthru
    _
  // Predicated region
  $region6: #{forward.1} parent=0 // pred_check
    _
  $region7: #{forward.1} parent=0 // pred_check_branch
    %10 = sbr.rel (0) target = $region9
  $region8: #{forward.1} parent=0 // pred_region
    _
  $region9: #{forward.1} parent=0 // pred_fallthru
    _
  %v11 = vld [vmem:[%s0] sm:$0x11]
  %v12 = vunpack.c.l.bf16 %v11
  %v13 = vunpack.c.h.bf16 %v11
  %v14 = vld [vmem:[%s1] sm:$0xff]
  %v15 = vunpack.c.l.bf16 %v14
  %v16 = vunpack.c.h.bf16 %v14
  %v17 = vlaneseq
  %v18 = vshrl.u32 %v17, 7
  %v19 = vsub.s32 0, %v18
  %v20 = vrot.slane %v12, %v19
  %v21 = vlaneseq
  %v22 = vshrl.u32 %v21, 7
  %v23 = vsub.s32 0, %v22
  %v24 = vrot.slane %v13, %v23
  %v25 = vmul.f32 %v20, %v15
  %v26 = vmul.f32 %v24, %v16
  %v27 = vld [vmem:[%s0] sm:$0x22]
  %v28 = vunpack.c.l.bf16 %v27
  %v29 = vunpack.c.h.bf16 %v27
  %s30 = scalar_lea.vmem %s1, 8
  %v31 = vld [vmem:[%s30] sm:$0xff]
  %v32 = vunpack.c.l.bf16 %v31
  %v33 = vunpack.c.h.bf16 %v31
  %v34 = vlaneseq
  %v35 = vshrl.u32 %v34, 7
  %v36 = vsub.s32 2, %v35
  %v37 = vrot.slane %v28, %v36
  %v38 = vlaneseq
  %v39 = vshrl.u32 %v38, 7
  %v40 = vsub.s32 2, %v39
  %v41 = vrot.slane %v29, %v40
  %v42 = vmul.f32 %v37, %v32
  %v43 = vmul.f32 %v41, %v33
  %v44 = vadd.f32 %v25, %v42
  %v45 = vadd.f32 %v26, %v43
  %v46 = vld [vmem:[%s0] sm:$0x44]
  %v47 = vunpack.c.l.bf16 %v46
  %v48 = vunpack.c.h.bf16 %v46
  %s49 = scalar_lea.vmem %s1, 16
  %v50 = vld [vmem:[%s49] sm:$0xff]
  %v51 = vunpack.c.l.bf16 %v50
  %v52 = vunpack.c.h.bf16 %v50
  %v53 = vlaneseq
  %v54 = vshrl.u32 %v53, 7
  %v55 = vsub.s32 4, %v54
  %v56 = vrot.slane %v47, %v55
  %v57 = vlaneseq
  %v58 = vshrl.u32 %v57, 7
  %v59 = vsub.s32 4, %v58
  %v60 = vrot.slane %v48, %v59
  %v61 = vmul.f32 %v56, %v51
  %v62 = vmul.f32 %v60, %v52
  %v63 = vadd.f32 %v44, %v61
  %v64 = vadd.f32 %v45, %v62
  %v65 = vld [vmem:[%s0] sm:$0x88]
  %v66 = vunpack.c.l.bf16 %v65
  %v67 = vunpack.c.h.bf16 %v65
  %s68 = scalar_lea.vmem %s1, 24
  %v69 = vld [vmem:[%s68] sm:$0xff]
  %v70 = vunpack.c.l.bf16 %v69
  %v71 = vunpack.c.h.bf16 %v69
  %v72 = vlaneseq
  %v73 = vshrl.u32 %v72, 7
  %v74 = vsub.s32 6, %v73
  %v75 = vrot.slane %v66, %v74
  %v76 = vlaneseq
  %v77 = vshrl.u32 %v76, 7
  %v78 = vsub.s32 6, %v77
  %v79 = vrot.slane %v67, %v78
  %v80 = vmul.f32 %v75, %v70
  %v81 = vmul.f32 %v79, %v71
  %v82 = vadd.f32 %v63, %v80
  %v83 = vadd.f32 %v64, %v81
  %v84 = vld [vmem:[%s0 + $0x8] sm:$0x11]
  %v85 = vunpack.c.l.bf16 %v84
  %v86 = vunpack.c.h.bf16 %v84
  %s87 = scalar_lea.vmem %s1, 32
  %v88 = vld [vmem:[%s87] sm:$0xff]
  %v89 = vunpack.c.l.bf16 %v88
  %v90 = vunpack.c.h.bf16 %v88
  %v91 = vlaneseq
  %v92 = vshrl.u32 %v91, 7
  %v93 = vsub.s32 0, %v92
  %v94 = vrot.slane %v85, %v93
  %v95 = vlaneseq
  %v96 = vshrl.u32 %v95, 7
  %v97 = vsub.s32 0, %v96
  %v98 = vrot.slane %v86, %v97
  %v99 = vmul.f32 %v94, %v89
  %v100 = vmul.f32 %v98, %v90
  %v101 = vadd.f32 %v82, %v99
  %v102 = vadd.f32 %v83, %v100
  %v103 = vld [vmem:[%s0 + $0x8] sm:$0x22]
  %v104 = vunpack.c.l.bf16 %v103
  %v105 = vunpack.c.h.bf16 %v103
  %s106 = scalar_lea.vmem %s1, 40
  %v107 = vld [vmem:[%s106] sm:$0xff]
  %v108 = vunpack.c.l.bf16 %v107
  %v109 = vunpack.c.h.bf16 %v107
  %v110 = vlaneseq
  %v111 = vshrl.u32 %v110, 7
  %v112 = vsub.s32 2, %v111
  %v113 = vrot.slane %v104, %v112
  %v114 = vlaneseq
  %v115 = vshrl.u32 %v114, 7
  %v116 = vsub.s32 2, %v115
  %v117 = vrot.slane %v105, %v116
  %v118 = vmul.f32 %v113, %v108
  %v119 = vmul.f32 %v117, %v109
  %v120 = vadd.f32 %v101, %v118
  %v121 = vadd.f32 %v102, %v119
  %v122 = vld [vmem:[%s0 + $0x8] sm:$0x44]
  %v123 = vunpack.c.l.bf16 %v122
  %v124 = vunpack.c.h.bf16 %v122
  %s125 = scalar_lea.vmem %s1, 48
  %v126 = vld [vmem:[%s125] sm:$0xff]
  %v127 = vunpack.c.l.bf16 %v126
  %v128 = vunpack.c.h.bf16 %v126
  %v129 = vlaneseq
  %v130 = vshrl.u32 %v129, 7
  %v131 = vsub.s32 4, %v130
  %v132 = vrot.slane %v123, %v131
  %v133 = vlaneseq
  %v134 = vshrl.u32 %v133, 7
  %v135 = vsub.s32 4, %v134
  %v136 = vrot.slane %v124, %v135
  %v137 = vmul.f32 %v132, %v127
  %v138 = vmul.f32 %v136, %v128
  %v139 = vadd.f32 %v120, %v137
  %v140 = vadd.f32 %v121, %v138
  %v141 = vld [vmem:[%s0 + $0x8] sm:$0x88]
  %v142 = vunpack.c.l.bf16 %v141
  %v143 = vunpack.c.h.bf16 %v141
  %s144 = scalar_lea.vmem %s1, 56
  %v145 = vld [vmem:[%s144] sm:$0xff]
  %v146 = vunpack.c.l.bf16 %v145
  %v147 = vunpack.c.h.bf16 %v145
  %v148 = vlaneseq
  %v149 = vshrl.u32 %v148, 7
  %v150 = vsub.s32 6, %v149
  %v151 = vrot.slane %v142, %v150
  %v152 = vlaneseq
  %v153 = vshrl.u32 %v152, 7
  %v154 = vsub.s32 6, %v153
  %v155 = vrot.slane %v143, %v154
  %v156 = vmul.f32 %v151, %v146
  %v157 = vmul.f32 %v155, %v147
  %v158 = vadd.f32 %v139, %v156
  %v159 = vadd.f32 %v140, %v157
  %v160 = vld [vmem:[%s0 + $0x10] sm:$0x11]
  %v161 = vunpack.c.l.bf16 %v160
  %v162 = vunpack.c.h.bf16 %v160
  %s163 = scalar_lea.vmem %s1, 64
  %v164 = vld [vmem:[%s163] sm:$0xff]
  %v165 = vunpack.c.l.bf16 %v164
  %v166 = vunpack.c.h.bf16 %v164
  %v167 = vlaneseq
  %v168 = vshrl.u32 %v167, 7
  %v169 = vsub.s32 0, %v168
  %v170 = vrot.slane %v161, %v169
  %v171 = vlaneseq
  %v172 = vshrl.u32 %v171, 7
  %v173 = vsub.s32 0, %v172
  %v174 = vrot.slane %v162, %v173
  %v175 = vmul.f32 %v170, %v165
  %v176 = vmul.f32 %v174, %v166
  %v177 = vadd.f32 %v158, %v175
  %v178 = vadd.f32 %v159, %v176
  %v179 = vld [vmem:[%s0 + $0x10] sm:$0x22]
  %v180 = vunpack.c.l.bf16 %v179
  %v181 = vunpack.c.h.bf16 %v179
  %s182 = scalar_lea.vmem %s1, 72
  %v183 = vld [vmem:[%s182] sm:$0xff]
  %v184 = vunpack.c.l.bf16 %v183
  %v185 = vunpack.c.h.bf16 %v183
  %v186 = vlaneseq
  %v187 = vshrl.u32 %v186, 7
  %v188 = vsub.s32 2, %v187
  %v189 = vrot.slane %v180, %v188
  %v190 = vlaneseq
  %v191 = vshrl.u32 %v190, 7
  %v192 = vsub.s32 2, %v191
  %v193 = vrot.slane %v181, %v192
  %v194 = vmul.f32 %v189, %v184
  %v195 = vmul.f32 %v193, %v185
  %v196 = vadd.f32 %v177, %v194
  %v197 = vadd.f32 %v178, %v195
  %v198 = vld [vmem:[%s0 + $0x10] sm:$0x44]
  %v199 = vunpack.c.l.bf16 %v198
  %v200 = vunpack.c.h.bf16 %v198
  %s201 = scalar_lea.vmem %s1, 80
  %v202 = vld [vmem:[%s201] sm:$0xff]
  %v203 = vunpack.c.l.bf16 %v202
  %v204 = vunpack.c.h.bf16 %v202
  %v205 = vlaneseq
  %v206 = vshrl.u32 %v205, 7
  %v207 = vsub.s32 4, %v206
  %v208 = vrot.slane %v199, %v207
  %v209 = vlaneseq
  %v210 = vshrl.u32 %v209, 7
  %v211 = vsub.s32 4, %v210
  %v212 = vrot.slane %v200, %v211
  %v213 = vmul.f32 %v208, %v203
  %v214 = vmul.f32 %v212, %v204
  %v215 = vadd.f32 %v196, %v213
  %v216 = vadd.f32 %v197, %v214
  %v217 = vld [vmem:[%s0 + $0x10] sm:$0x88]
  %v218 = vunpack.c.l.bf16 %v217
  %v219 = vunpack.c.h.bf16 %v217
  %s220 = scalar_lea.vmem %s1, 88
  %v221 = vld [vmem:[%s220] sm:$0xff]
  %v222 = vunpack.c.l.bf16 %v221
  %v223 = vunpack.c.h.bf16 %v221
  %v224 = vlaneseq
  %v225 = vshrl.u32 %v224, 7
  %v226 = vsub.s32 6, %v225
  %v227 = vrot.slane %v218, %v226
  %v228 = vlaneseq
  %v229 = vshrl.u32 %v228, 7
  %v230 = vsub.s32 6, %v229
  %v231 = vrot.slane %v219, %v230
  %v232 = vmul.f32 %v227, %v222
  %v233 = vmul.f32 %v231, %v223
  %v234 = vadd.f32 %v215, %v232
  %v235 = vadd.f32 %v216, %v233
  %v236 = vld [vmem:[%s0 + $0x18] sm:$0x11]
  %v237 = vunpack.c.l.bf16 %v236
  %v238 = vunpack.c.h.bf16 %v236
  %s239 = scalar_lea.vmem %s1, 96
  %v240 = vld [vmem:[%s239] sm:$0xff]
  %v241 = vunpack.c.l.bf16 %v240
  %v242 = vunpack.c.h.bf16 %v240
  %v243 = vlaneseq
  %v244 = vshrl.u32 %v243, 7
  %v245 = vsub.s32 0, %v244
  %v246 = vrot.slane %v237, %v245
  %v247 = vlaneseq
  %v248 = vshrl.u32 %v247, 7
  %v249 = vsub.s32 0, %v248
  %v250 = vrot.slane %v238, %v249
  %v251 = vmul.f32 %v246, %v241
  %v252 = vmul.f32 %v250, %v242
  %v253 = vadd.f32 %v234, %v251
  %v254 = vadd.f32 %v235, %v252
  %v255 = vld [vmem:[%s0 + $0x18] sm:$0x22]
  %v256 = vunpack.c.l.bf16 %v255
  %v257 = vunpack.c.h.bf16 %v255
  %s258 = scalar_lea.vmem %s1, 104
  %v259 = vld [vmem:[%s258] sm:$0xff]
  %v260 = vunpack.c.l.bf16 %v259
  %v261 = vunpack.c.h.bf16 %v259
  %v262 = vlaneseq
  %v263 = vshrl.u32 %v262, 7
  %v264 = vsub.s32 2, %v263
  %v265 = vrot.slane %v256, %v264
  %v266 = vlaneseq
  %v267 = vshrl.u32 %v266, 7
  %v268 = vsub.s32 2, %v267
  %v269 = vrot.slane %v257, %v268
  %v270 = vmul.f32 %v265, %v260
  %v271 = vmul.f32 %v269, %v261
  %v272 = vadd.f32 %v253, %v270
  %v273 = vadd.f32 %v254, %v271
  %v274 = vld [vmem:[%s0 + $0x18] sm:$0x44]
  %v275 = vunpack.c.l.bf16 %v274
  %v276 = vunpack.c.h.bf16 %v274
  %s277 = scalar_lea.vmem %s1, 112
  %v278 = vld [vmem:[%s277] sm:$0xff]
  %v279 = vunpack.c.l.bf16 %v278
  %v280 = vunpack.c.h.bf16 %v278
  %v281 = vlaneseq
  %v282 = vshrl.u32 %v281, 7
  %v283 = vsub.s32 4, %v282
  %v284 = vrot.slane %v275, %v283
  %v285 = vlaneseq
  %v286 = vshrl.u32 %v285, 7
  %v287 = vsub.s32 4, %v286
  %v288 = vrot.slane %v276, %v287
  %v289 = vmul.f32 %v284, %v279
  %v290 = vmul.f32 %v288, %v280
  %v291 = vadd.f32 %v272, %v289
  %v292 = vadd.f32 %v273, %v290
  %v293 = vld [vmem:[%s0 + $0x18] sm:$0x88]
  %v294 = vunpack.c.l.bf16 %v293
  %v295 = vunpack.c.h.bf16 %v293
  %s296 = scalar_lea.vmem %s1, 120
  %v297 = vld [vmem:[%s296] sm:$0xff]
  %v298 = vunpack.c.l.bf16 %v297
  %v299 = vunpack.c.h.bf16 %v297
  %v300 = vlaneseq
  %v301 = vshrl.u32 %v300, 7
  %v302 = vsub.s32 6, %v301
  %v303 = vrot.slane %v294, %v302
  %v304 = vlaneseq
  %v305 = vshrl.u32 %v304, 7
  %v306 = vsub.s32 6, %v305
  %v307 = vrot.slane %v295, %v306
  %v308 = vmul.f32 %v303, %v298
  %v309 = vmul.f32 %v307, %v299
  %v310 = vadd.f32 %v291, %v308
  %v311 = vadd.f32 %v292, %v309
  %v312 = vld [vmem:[%s0 + $0x20] sm:$0x11]
  %v313 = vunpack.c.l.bf16 %v312
  %v314 = vunpack.c.h.bf16 %v312
  %s315 = scalar_lea.vmem %s1, 128
  %v316 = vld [vmem:[%s315] sm:$0xff]
  %v317 = vunpack.c.l.bf16 %v316
  %v318 = vunpack.c.h.bf16 %v316
  %v319 = vlaneseq
  %v320 = vshrl.u32 %v319, 7
  %v321 = vsub.s32 0, %v320
  %v322 = vrot.slane %v313, %v321
  %v323 = vlaneseq
  %v324 = vshrl.u32 %v323, 7
  %v325 = vsub.s32 0, %v324
  %v326 = vrot.slane %v314, %v325
  %v327 = vmul.f32 %v322, %v317
  %v328 = vmul.f32 %v326, %v318
  %v329 = vadd.f32 %v310, %v327
  %v330 = vadd.f32 %v311, %v328
  %v331 = vld [vmem:[%s0 + $0x20] sm:$0x22]
  %v332 = vunpack.c.l.bf16 %v331
  %v333 = vunpack.c.h.bf16 %v331
  %s334 = scalar_lea.vmem %s1, 136
  %v335 = vld [vmem:[%s334] sm:$0xff]
  %v336 = vunpack.c.l.bf16 %v335
  %v337 = vunpack.c.h.bf16 %v335
  %v338 = vlaneseq
  %v339 = vshrl.u32 %v338, 7
  %v340 = vsub.s32 2, %v339
  %v341 = vrot.slane %v332, %v340
  %v342 = vlaneseq
  %v343 = vshrl.u32 %v342, 7
  %v344 = vsub.s32 2, %v343
  %v345 = vrot.slane %v333, %v344
  %v346 = vmul.f32 %v341, %v336
  %v347 = vmul.f32 %v345, %v337
  %v348 = vadd.f32 %v329, %v346
  %v349 = vadd.f32 %v330, %v347
  %v350 = vld [vmem:[%s0 + $0x20] sm:$0x44]
  %v351 = vunpack.c.l.bf16 %v350
  %v352 = vunpack.c.h.bf16 %v350
  %s353 = scalar_lea.vmem %s1, 144
  %v354 = vld [vmem:[%s353] sm:$0xff]
  %v355 = vunpack.c.l.bf16 %v354
  %v356 = vunpack.c.h.bf16 %v354
  %v357 = vlaneseq
  %v358 = vshrl.u32 %v357, 7
  %v359 = vsub.s32 4, %v358
  %v360 = vrot.slane %v351, %v359
  %v361 = vlaneseq
  %v362 = vshrl.u32 %v361, 7
  %v363 = vsub.s32 4, %v362
  %v364 = vrot.slane %v352, %v363
  %v365 = vmul.f32 %v360, %v355
  %v366 = vmul.f32 %v364, %v356
  %v367 = vadd.f32 %v348, %v365
  %v368 = vadd.f32 %v349, %v366
  %v369 = vld [vmem:[%s0 + $0x20] sm:$0x88]
  %v370 = vunpack.c.l.bf16 %v369
  %v371 = vunpack.c.h.bf16 %v369
  %s372 = scalar_lea.vmem %s1, 152
  %v373 = vld [vmem:[%s372] sm:$0xff]
  %v374 = vunpack.c.l.bf16 %v373
  %v375 = vunpack.c.h.bf16 %v373
  %v376 = vlaneseq
  %v377 = vshrl.u32 %v376, 7
  %v378 = vsub.s32 6, %v377
  %v379 = vrot.slane %v370, %v378
  %v380 = vlaneseq
  %v381 = vshrl.u32 %v380, 7
  %v382 = vsub.s32 6, %v381
  %v383 = vrot.slane %v371, %v382
  %v384 = vmul.f32 %v379, %v374
  %v385 = vmul.f32 %v383, %v375
  %v386 = vadd.f32 %v367, %v384
  %v387 = vadd.f32 %v368, %v385
  %v388 = vld [vmem:[%s0 + $0x28] sm:$0x11]
  %v389 = vunpack.c.l.bf16 %v388
  %v390 = vunpack.c.h.bf16 %v388
  %s391 = scalar_lea.vmem %s1, 160
  %v392 = vld [vmem:[%s391] sm:$0xff]
  %v393 = vunpack.c.l.bf16 %v392
  %v394 = vunpack.c.h.bf16 %v392
  %v395 = vlaneseq
  %v396 = vshrl.u32 %v395, 7
  %v397 = vsub.s32 0, %v396
  %v398 = vrot.slane %v389, %v397
  %v399 = vlaneseq
  %v400 = vshrl.u32 %v399, 7
  %v401 = vsub.s32 0, %v400
  %v402 = vrot.slane %v390, %v401
  %v403 = vmul.f32 %v398, %v393
  %v404 = vmul.f32 %v402, %v394
  %v405 = vadd.f32 %v386, %v403
  %v406 = vadd.f32 %v387, %v404
  %v407 = vld [vmem:[%s0 + $0x28] sm:$0x22]
  %v408 = vunpack.c.l.bf16 %v407
  %v409 = vunpack.c.h.bf16 %v407
  %s410 = scalar_lea.vmem %s1, 168
  %v411 = vld [vmem:[%s410] sm:$0xff]
  %v412 = vunpack.c.l.bf16 %v411
  %v413 = vunpack.c.h.bf16 %v411
  %v414 = vlaneseq
  %v415 = vshrl.u32 %v414, 7
  %v416 = vsub.s32 2, %v415
  %v417 = vrot.slane %v408, %v416
  %v418 = vlaneseq
  %v419 = vshrl.u32 %v418, 7
  %v420 = vsub.s32 2, %v419
  %v421 = vrot.slane %v409, %v420
  %v422 = vmul.f32 %v417, %v412
  %v423 = vmul.f32 %v421, %v413
  %v424 = vadd.f32 %v405, %v422
  %v425 = vadd.f32 %v406, %v423
  %v426 = vld [vmem:[%s0 + $0x28] sm:$0x44]
  %v427 = vunpack.c.l.bf16 %v426
  %v428 = vunpack.c.h.bf16 %v426
  %s429 = scalar_lea.vmem %s1, 176
  %v430 = vld [vmem:[%s429] sm:$0xff]
  %v431 = vunpack.c.l.bf16 %v430
  %v432 = vunpack.c.h.bf16 %v430
  %v433 = vlaneseq
  %v434 = vshrl.u32 %v433, 7
  %v435 = vsub.s32 4, %v434
  %v436 = vrot.slane %v427, %v435
  %v437 = vlaneseq
  %v438 = vshrl.u32 %v437, 7
  %v439 = vsub.s32 4, %v438
  %v440 = vrot.slane %v428, %v439
  %v441 = vmul.f32 %v436, %v431
  %v442 = vmul.f32 %v440, %v432
  %v443 = vadd.f32 %v424, %v441
  %v444 = vadd.f32 %v425, %v442
  %v445 = vld [vmem:[%s0 + $0x28] sm:$0x88]
  %v446 = vunpack.c.l.bf16 %v445
  %v447 = vunpack.c.h.bf16 %v445
  %s448 = scalar_lea.vmem %s1, 184
  %v449 = vld [vmem:[%s448] sm:$0xff]
  %v450 = vunpack.c.l.bf16 %v449
  %v451 = vunpack.c.h.bf16 %v449
  %v452 = vlaneseq
  %v453 = vshrl.u32 %v452, 7
  %v454 = vsub.s32 6, %v453
  %v455 = vrot.slane %v446, %v454
  %v456 = vlaneseq
  %v457 = vshrl.u32 %v456, 7
  %v458 = vsub.s32 6, %v457
  %v459 = vrot.slane %v447, %v458
  %v460 = vmul.f32 %v455, %v450
  %v461 = vmul.f32 %v459, %v451
  %v462 = vadd.f32 %v443, %v460
  %v463 = vadd.f32 %v444, %v461
  %v464 = vld [vmem:[%s0 + $0x30] sm:$0x11]
  %v465 = vunpack.c.l.bf16 %v464
  %v466 = vunpack.c.h.bf16 %v464
  %s467 = scalar_lea.vmem %s1, 192
  %v468 = vld [vmem:[%s467] sm:$0xff]
  %v469 = vunpack.c.l.bf16 %v468
  %v470 = vunpack.c.h.bf16 %v468
  %v471 = vlaneseq
  %v472 = vshrl.u32 %v471, 7
  %v473 = vsub.s32 0, %v472
  %v474 = vrot.slane %v465, %v473
  %v475 = vlaneseq
  %v476 = vshrl.u32 %v475, 7
  %v477 = vsub.s32 0, %v476
  %v478 = vrot.slane %v466, %v477
  %v479 = vmul.f32 %v474, %v469
  %v480 = vmul.f32 %v478, %v470
  %v481 = vadd.f32 %v462, %v479
  %v482 = vadd.f32 %v463, %v480
  %v483 = vld [vmem:[%s0 + $0x30] sm:$0x22]
  %v484 = vunpack.c.l.bf16 %v483
  %v485 = vunpack.c.h.bf16 %v483
  %s486 = scalar_lea.vmem %s1, 200
  %v487 = vld [vmem:[%s486] sm:$0xff]
  %v488 = vunpack.c.l.bf16 %v487
  %v489 = vunpack.c.h.bf16 %v487
  %v490 = vlaneseq
  %v491 = vshrl.u32 %v490, 7
  %v492 = vsub.s32 2, %v491
  %v493 = vrot.slane %v484, %v492
  %v494 = vlaneseq
  %v495 = vshrl.u32 %v494, 7
  %v496 = vsub.s32 2, %v495
  %v497 = vrot.slane %v485, %v496
  %v498 = vmul.f32 %v493, %v488
  %v499 = vmul.f32 %v497, %v489
  %v500 = vadd.f32 %v481, %v498
  %v501 = vadd.f32 %v482, %v499
  %v502 = vld [vmem:[%s0 + $0x30] sm:$0x44]
  %v503 = vunpack.c.l.bf16 %v502
  %v504 = vunpack.c.h.bf16 %v502
  %s505 = scalar_lea.vmem %s1, 208
  %v506 = vld [vmem:[%s505] sm:$0xff]
  %v507 = vunpack.c.l.bf16 %v506
  %v508 = vunpack.c.h.bf16 %v506
  %v509 = vlaneseq
  %v510 = vshrl.u32 %v509, 7
  %v511 = vsub.s32 4, %v510
  %v512 = vrot.slane %v503, %v511
  %v513 = vlaneseq
  %v514 = vshrl.u32 %v513, 7
  %v515 = vsub.s32 4, %v514
  %v516 = vrot.slane %v504, %v515
  %v517 = vmul.f32 %v512, %v507
  %v518 = vmul.f32 %v516, %v508
  %v519 = vadd.f32 %v500, %v517
  %v520 = vadd.f32 %v501, %v518
  %v521 = vld [vmem:[%s0 + $0x30] sm:$0x88]
  %v522 = vunpack.c.l.bf16 %v521
  %v523 = vunpack.c.h.bf16 %v521
  %s524 = scalar_lea.vmem %s1, 216
  %v525 = vld [vmem:[%s524] sm:$0xff]
  %v526 = vunpack.c.l.bf16 %v525
  %v527 = vunpack.c.h.bf16 %v525
  %v528 = vlaneseq
  %v529 = vshrl.u32 %v528, 7
  %v530 = vsub.s32 6, %v529
  %v531 = vrot.slane %v522, %v530
  %v532 = vlaneseq
  %v533 = vshrl.u32 %v532, 7
  %v534 = vsub.s32 6, %v533
  %v535 = vrot.slane %v523, %v534
  %v536 = vmul.f32 %v531, %v526
  %v537 = vmul.f32 %v535, %v527
  %v538 = vadd.f32 %v519, %v536
  %v539 = vadd.f32 %v520, %v537
  %v540 = vld [vmem:[%s0 + $0x38] sm:$0x11]
  %v541 = vunpack.c.l.bf16 %v540
  %v542 = vunpack.c.h.bf16 %v540
  %s543 = scalar_lea.vmem %s1, 224
  %v544 = vld [vmem:[%s543] sm:$0xff]
  %v545 = vunpack.c.l.bf16 %v544
  %v546 = vunpack.c.h.bf16 %v544
  %v547 = vlaneseq
  %v548 = vshrl.u32 %v547, 7
  %v549 = vsub.s32 0, %v548
  %v550 = vrot.slane %v541, %v549
  %v551 = vlaneseq
  %v552 = vshrl.u32 %v551, 7
  %v553 = vsub.s32 0, %v552
  %v554 = vrot.slane %v542, %v553
  %v555 = vmul.f32 %v550, %v545
  %v556 = vmul.f32 %v554, %v546
  %v557 = vadd.f32 %v538, %v555
  %v558 = vadd.f32 %v539, %v556
  %v559 = vld [vmem:[%s0 + $0x38] sm:$0x22]
  %v560 = vunpack.c.l.bf16 %v559
  %v561 = vunpack.c.h.bf16 %v559
  %s562 = scalar_lea.vmem %s1, 232
  %v563 = vld [vmem:[%s562] sm:$0xff]
  %v564 = vunpack.c.l.bf16 %v563
  %v565 = vunpack.c.h.bf16 %v563
  %v566 = vlaneseq
  %v567 = vshrl.u32 %v566, 7
  %v568 = vsub.s32 2, %v567
  %v569 = vrot.slane %v560, %v568
  %v570 = vlaneseq
  %v571 = vshrl.u32 %v570, 7
  %v572 = vsub.s32 2, %v571
  %v573 = vrot.slane %v561, %v572
  %v574 = vmul.f32 %v569, %v564
  %v575 = vmul.f32 %v573, %v565
  %v576 = vadd.f32 %v557, %v574
  %v577 = vadd.f32 %v558, %v575
  %v578 = vld [vmem:[%s0 + $0x38] sm:$0x44]
  %v579 = vunpack.c.l.bf16 %v578
  %v580 = vunpack.c.h.bf16 %v578
  %s581 = scalar_lea.vmem %s1, 240
  %v582 = vld [vmem:[%s581] sm:$0xff]
  %v583 = vunpack.c.l.bf16 %v582
  %v584 = vunpack.c.h.bf16 %v582
  %v585 = vlaneseq
  %v586 = vshrl.u32 %v585, 7
  %v587 = vsub.s32 4, %v586
  %v588 = vrot.slane %v579, %v587
  %v589 = vlaneseq
  %v590 = vshrl.u32 %v589, 7
  %v591 = vsub.s32 4, %v590
  %v592 = vrot.slane %v580, %v591
  %v593 = vmul.f32 %v588, %v583
  %v594 = vmul.f32 %v592, %v584
  %v595 = vadd.f32 %v576, %v593
  %v596 = vadd.f32 %v577, %v594
  %v597 = vld [vmem:[%s0 + $0x38] sm:$0x88]
  %v598 = vunpack.c.l.bf16 %v597
  %v599 = vunpack.c.h.bf16 %v597
  %s600 = scalar_lea.vmem %s1, 248
  %v601 = vld [vmem:[%s600] sm:$0xff]
  %v602 = vunpack.c.l.bf16 %v601
  %v603 = vunpack.c.h.bf16 %v601
  %v604 = vlaneseq
  %v605 = vshrl.u32 %v604, 7
  %v606 = vsub.s32 6, %v605
  %v607 = vrot.slane %v598, %v606
  %v608 = vlaneseq
  %v609 = vshrl.u32 %v608, 7
  %v610 = vsub.s32 6, %v609
  %v611 = vrot.slane %v599, %v610
  %v612 = vmul.f32 %v607, %v602
  %v613 = vmul.f32 %v611, %v603
  %v614 = vadd.f32 %v595, %v612
  %v615 = vadd.f32 %v596, %v613
  %v616 = vld [vmem:[%s0 + $0x40] sm:$0x11]
  %v617 = vunpack.c.l.bf16 %v616
  %v618 = vunpack.c.h.bf16 %v616
  %s619 = scalar_lea.vmem %s1, 256
  %v620 = vld [vmem:[%s619] sm:$0xff]
  %v621 = vunpack.c.l.bf16 %v620
  %v622 = vunpack.c.h.bf16 %v620
  %v623 = vlaneseq
  %v624 = vshrl.u32 %v623, 7
  %v625 = vsub.s32 0, %v624
  %v626 = vrot.slane %v617, %v625
  %v627 = vlaneseq
  %v628 = vshrl.u32 %v627, 7
  %v629 = vsub.s32 0, %v628
  %v630 = vrot.slane %v618, %v629
  %v631 = vmul.f32 %v626, %v621
  %v632 = vmul.f32 %v630, %v622
  %v633 = vadd.f32 %v614, %v631
  %v634 = vadd.f32 %v615, %v632
  %v635 = vld [vmem:[%s0 + $0x40] sm:$0x22]
  %v636 = vunpack.c.l.bf16 %v635
  %v637 = vunpack.c.h.bf16 %v635
  %s638 = scalar_lea.vmem %s1, 264
  %v639 = vld [vmem:[%s638] sm:$0xff]
  %v640 = vunpack.c.l.bf16 %v639
  %v641 = vunpack.c.h.bf16 %v639
  %v642 = vlaneseq
  %v643 = vshrl.u32 %v642, 7
  %v644 = vsub.s32 2, %v643
  %v645 = vrot.slane %v636, %v644
  %v646 = vlaneseq
  %v647 = vshrl.u32 %v646, 7
  %v648 = vsub.s32 2, %v647
  %v649 = vrot.slane %v637, %v648
  %v650 = vmul.f32 %v645, %v640
  %v651 = vmul.f32 %v649, %v641
  %v652 = vadd.f32 %v633, %v650
  %v653 = vadd.f32 %v634, %v651
  %v654 = vld [vmem:[%s0 + $0x40] sm:$0x44]
  %v655 = vunpack.c.l.bf16 %v654
  %v656 = vunpack.c.h.bf16 %v654
  %s657 = scalar_lea.vmem %s1, 272
  %v658 = vld [vmem:[%s657] sm:$0xff]
  %v659 = vunpack.c.l.bf16 %v658
  %v660 = vunpack.c.h.bf16 %v658
  %v661 = vlaneseq
  %v662 = vshrl.u32 %v661, 7
  %v663 = vsub.s32 4, %v662
  %v664 = vrot.slane %v655, %v663
  %v665 = vlaneseq
  %v666 = vshrl.u32 %v665, 7
  %v667 = vsub.s32 4, %v666
  %v668 = vrot.slane %v656, %v667
  %v669 = vmul.f32 %v664, %v659
  %v670 = vmul.f32 %v668, %v660
  %v671 = vadd.f32 %v652, %v669
  %v672 = vadd.f32 %v653, %v670
  %v673 = vld [vmem:[%s0 + $0x40] sm:$0x88]
  %v674 = vunpack.c.l.bf16 %v673
  %v675 = vunpack.c.h.bf16 %v673
  %s676 = scalar_lea.vmem %s1, 280
  %v677 = vld [vmem:[%s676] sm:$0xff]
  %v678 = vunpack.c.l.bf16 %v677
  %v679 = vunpack.c.h.bf16 %v677
  %v680 = vlaneseq
  %v681 = vshrl.u32 %v680, 7
  %v682 = vsub.s32 6, %v681
  %v683 = vrot.slane %v674, %v682
  %v684 = vlaneseq
  %v685 = vshrl.u32 %v684, 7
  %v686 = vsub.s32 6, %v685
  %v687 = vrot.slane %v675, %v686
  %v688 = vmul.f32 %v683, %v678
  %v689 = vmul.f32 %v687, %v679
  %v690 = vadd.f32 %v671, %v688
  %v691 = vadd.f32 %v672, %v689
  %692 = vst [vmem:[%s2] sm:$0xff] %v690
  %693 = vst [vmem:[%s2 + $0x8] sm:$0xff] %v691
  %v694 = vld [vmem:[%s0] sm:$0x11]
  %v695 = vunpack.c.l.bf16 %v694
  %v696 = vunpack.c.h.bf16 %v694
  %v697 = vld [vmem:[%s1] sm:$0xff]
  %v698 = vunpack.c.l.bf16 %v697
  %v699 = vunpack.c.h.bf16 %v697
  %v700 = vlaneseq
  %v701 = vshrl.u32 %v700, 7
  %v702 = vsub.s32 1, %v701
  %v703 = vrot.slane %v695, %v702
  %v704 = vlaneseq
  %v705 = vshrl.u32 %v704, 7
  %v706 = vsub.s32 1, %v705
  %v707 = vrot.slane %v696, %v706
  %v708 = vmul.f32 %v703, %v698
  %v709 = vmul.f32 %v707, %v699
  %v710 = vld [vmem:[%s0] sm:$0x22]
  %v711 = vunpack.c.l.bf16 %v710
  %v712 = vunpack.c.h.bf16 %v710
  %v713 = vld [vmem:[%s30] sm:$0xff]
  %v714 = vunpack.c.l.bf16 %v713
  %v715 = vunpack.c.h.bf16 %v713
  %v716 = vlaneseq
  %v717 = vshrl.u32 %v716, 7
  %v718 = vsub.s32 3, %v717
  %v719 = vrot.slane %v711, %v718
  %v720 = vlaneseq
  %v721 = vshrl.u32 %v720, 7
  %v722 = vsub.s32 3, %v721
  %v723 = vrot.slane %v712, %v722
  %v724 = vmul.f32 %v719, %v714
  %v725 = vmul.f32 %v723, %v715
  %v726 = vadd.f32 %v708, %v724
  %v727 = vadd.f32 %v709, %v725
  %v728 = vld [vmem:[%s0] sm:$0x44]
  %v729 = vunpack.c.l.bf16 %v728
  %v730 = vunpack.c.h.bf16 %v728
  %v731 = vld [vmem:[%s49] sm:$0xff]
  %v732 = vunpack.c.l.bf16 %v731
  %v733 = vunpack.c.h.bf16 %v731
  %v734 = vlaneseq
  %v735 = vshrl.u32 %v734, 7
  %v736 = vsub.s32 5, %v735
  %v737 = vrot.slane %v729, %v736
  %v738 = vlaneseq
  %v739 = vshrl.u32 %v738, 7
  %v740 = vsub.s32 5, %v739
  %v741 = vrot.slane %v730, %v740
  %v742 = vmul.f32 %v737, %v732
  %v743 = vmul.f32 %v741, %v733
  %v744 = vadd.f32 %v726, %v742
  %v745 = vadd.f32 %v727, %v743
  %v746 = vld [vmem:[%s0] sm:$0x88]
  %v747 = vunpack.c.l.bf16 %v746
  %v748 = vunpack.c.h.bf16 %v746
  %v749 = vld [vmem:[%s68] sm:$0xff]
  %v750 = vunpack.c.l.bf16 %v749
  %v751 = vunpack.c.h.bf16 %v749
  %v752 = vlaneseq
  %v753 = vshrl.u32 %v752, 7
  %v754 = vsub.s32 7, %v753
  %v755 = vrot.slane %v747, %v754
  %v756 = vlaneseq
  %v757 = vshrl.u32 %v756, 7
  %v758 = vsub.s32 7, %v757
  %v759 = vrot.slane %v748, %v758
  %v760 = vmul.f32 %v755, %v750
  %v761 = vmul.f32 %v759, %v751
  %v762 = vadd.f32 %v744, %v760
  %v763 = vadd.f32 %v745, %v761
  %v764 = vld [vmem:[%s0 + $0x8] sm:$0x11]
  %v765 = vunpack.c.l.bf16 %v764
  %v766 = vunpack.c.h.bf16 %v764
  %v767 = vld [vmem:[%s87] sm:$0xff]
  %v768 = vunpack.c.l.bf16 %v767
  %v769 = vunpack.c.h.bf16 %v767
  %v770 = vlaneseq
  %v771 = vshrl.u32 %v770, 7
  %v772 = vsub.s32 1, %v771
  %v773 = vrot.slane %v765, %v772
  %v774 = vlaneseq
  %v775 = vshrl.u32 %v774, 7
  %v776 = vsub.s32 1, %v775
  %v777 = vrot.slane %v766, %v776
  %v778 = vmul.f32 %v773, %v768
  %v779 = vmul.f32 %v777, %v769
  %v780 = vadd.f32 %v762, %v778
  %v781 = vadd.f32 %v763, %v779
  %v782 = vld [vmem:[%s0 + $0x8] sm:$0x22]
  %v783 = vunpack.c.l.bf16 %v782
  %v784 = vunpack.c.h.bf16 %v782
  %v785 = vld [vmem:[%s106] sm:$0xff]
  %v786 = vunpack.c.l.bf16 %v785
  %v787 = vunpack.c.h.bf16 %v785
  %v788 = vlaneseq
  %v789 = vshrl.u32 %v788, 7
  %v790 = vsub.s32 3, %v789
  %v791 = vrot.slane %v783, %v790
  %v792 = vlaneseq
  %v793 = vshrl.u32 %v792, 7
  %v794 = vsub.s32 3, %v793
  %v795 = vrot.slane %v784, %v794
  %v796 = vmul.f32 %v791, %v786
  %v797 = vmul.f32 %v795, %v787
  %v798 = vadd.f32 %v780, %v796
  %v799 = vadd.f32 %v781, %v797
  %v800 = vld [vmem:[%s0 + $0x8] sm:$0x44]
  %v801 = vunpack.c.l.bf16 %v800
  %v802 = vunpack.c.h.bf16 %v800
  %v803 = vld [vmem:[%s125] sm:$0xff]
  %v804 = vunpack.c.l.bf16 %v803
  %v805 = vunpack.c.h.bf16 %v803
  %v806 = vlaneseq
  %v807 = vshrl.u32 %v806, 7
  %v808 = vsub.s32 5, %v807
  %v809 = vrot.slane %v801, %v808
  %v810 = vlaneseq
  %v811 = vshrl.u32 %v810, 7
  %v812 = vsub.s32 5, %v811
  %v813 = vrot.slane %v802, %v812
  %v814 = vmul.f32 %v809, %v804
  %v815 = vmul.f32 %v813, %v805
  %v816 = vadd.f32 %v798, %v814
  %v817 = vadd.f32 %v799, %v815
  %v818 = vld [vmem:[%s0 + $0x8] sm:$0x88]
  %v819 = vunpack.c.l.bf16 %v818
  %v820 = vunpack.c.h.bf16 %v818
  %v821 = vld [vmem:[%s144] sm:$0xff]
  %v822 = vunpack.c.l.bf16 %v821
  %v823 = vunpack.c.h.bf16 %v821
  %v824 = vlaneseq
  %v825 = vshrl.u32 %v824, 7
  %v826 = vsub.s32 7, %v825
  %v827 = vrot.slane %v819, %v826
  %v828 = vlaneseq
  %v829 = vshrl.u32 %v828, 7
  %v830 = vsub.s32 7, %v829
  %v831 = vrot.slane %v820, %v830
  %v832 = vmul.f32 %v827, %v822
  %v833 = vmul.f32 %v831, %v823
  %v834 = vadd.f32 %v816, %v832
  %v835 = vadd.f32 %v817, %v833
  %v836 = vld [vmem:[%s0 + $0x10] sm:$0x11]
  %v837 = vunpack.c.l.bf16 %v836
  %v838 = vunpack.c.h.bf16 %v836
  %v839 = vld [vmem:[%s163] sm:$0xff]
  %v840 = vunpack.c.l.bf16 %v839
  %v841 = vunpack.c.h.bf16 %v839
  %v842 = vlaneseq
  %v843 = vshrl.u32 %v842, 7
  %v844 = vsub.s32 1, %v843
  %v845 = vrot.slane %v837, %v844
  %v846 = vlaneseq
  %v847 = vshrl.u32 %v846, 7
  %v848 = vsub.s32 1, %v847
  %v849 = vrot.slane %v838, %v848
  %v850 = vmul.f32 %v845, %v840
  %v851 = vmul.f32 %v849, %v841
  %v852 = vadd.f32 %v834, %v850
  %v853 = vadd.f32 %v835, %v851
  %v854 = vld [vmem:[%s0 + $0x10] sm:$0x22]
  %v855 = vunpack.c.l.bf16 %v854
  %v856 = vunpack.c.h.bf16 %v854
  %v857 = vld [vmem:[%s182] sm:$0xff]
  %v858 = vunpack.c.l.bf16 %v857
  %v859 = vunpack.c.h.bf16 %v857
  %v860 = vlaneseq
  %v861 = vshrl.u32 %v860, 7
  %v862 = vsub.s32 3, %v861
  %v863 = vrot.slane %v855, %v862
  %v864 = vlaneseq
  %v865 = vshrl.u32 %v864, 7
  %v866 = vsub.s32 3, %v865
  %v867 = vrot.slane %v856, %v866
  %v868 = vmul.f32 %v863, %v858
  %v869 = vmul.f32 %v867, %v859
  %v870 = vadd.f32 %v852, %v868
  %v871 = vadd.f32 %v853, %v869
  %v872 = vld [vmem:[%s0 + $0x10] sm:$0x44]
  %v873 = vunpack.c.l.bf16 %v872
  %v874 = vunpack.c.h.bf16 %v872
  %v875 = vld [vmem:[%s201] sm:$0xff]
  %v876 = vunpack.c.l.bf16 %v875
  %v877 = vunpack.c.h.bf16 %v875
  %v878 = vlaneseq
  %v879 = vshrl.u32 %v878, 7
  %v880 = vsub.s32 5, %v879
  %v881 = vrot.slane %v873, %v880
  %v882 = vlaneseq
  %v883 = vshrl.u32 %v882, 7
  %v884 = vsub.s32 5, %v883
  %v885 = vrot.slane %v874, %v884
  %v886 = vmul.f32 %v881, %v876
  %v887 = vmul.f32 %v885, %v877
  %v888 = vadd.f32 %v870, %v886
  %v889 = vadd.f32 %v871, %v887
  %v890 = vld [vmem:[%s0 + $0x10] sm:$0x88]
  %v891 = vunpack.c.l.bf16 %v890
  %v892 = vunpack.c.h.bf16 %v890
  %v893 = vld [vmem:[%s220] sm:$0xff]
  %v894 = vunpack.c.l.bf16 %v893
  %v895 = vunpack.c.h.bf16 %v893
  %v896 = vlaneseq
  %v897 = vshrl.u32 %v896, 7
  %v898 = vsub.s32 7, %v897
  %v899 = vrot.slane %v891, %v898
  %v900 = vlaneseq
  %v901 = vshrl.u32 %v900, 7
  %v902 = vsub.s32 7, %v901
  %v903 = vrot.slane %v892, %v902
  %v904 = vmul.f32 %v899, %v894
  %v905 = vmul.f32 %v903, %v895
  %v906 = vadd.f32 %v888, %v904
  %v907 = vadd.f32 %v889, %v905
  %v908 = vld [vmem:[%s0 + $0x18] sm:$0x11]
  %v909 = vunpack.c.l.bf16 %v908
  %v910 = vunpack.c.h.bf16 %v908
  %v911 = vld [vmem:[%s239] sm:$0xff]
  %v912 = vunpack.c.l.bf16 %v911
  %v913 = vunpack.c.h.bf16 %v911
  %v914 = vlaneseq
  %v915 = vshrl.u32 %v914, 7
  %v916 = vsub.s32 1, %v915
  %v917 = vrot.slane %v909, %v916
  %v918 = vlaneseq
  %v919 = vshrl.u32 %v918, 7
  %v920 = vsub.s32 1, %v919
  %v921 = vrot.slane %v910, %v920
  %v922 = vmul.f32 %v917, %v912
  %v923 = vmul.f32 %v921, %v913
  %v924 = vadd.f32 %v906, %v922
  %v925 = vadd.f32 %v907, %v923
  %v926 = vld [vmem:[%s0 + $0x18] sm:$0x22]
  %v927 = vunpack.c.l.bf16 %v926
  %v928 = vunpack.c.h.bf16 %v926
  %v929 = vld [vmem:[%s258] sm:$0xff]
  %v930 = vunpack.c.l.bf16 %v929
  %v931 = vunpack.c.h.bf16 %v929
  %v932 = vlaneseq
  %v933 = vshrl.u32 %v932, 7
  %v934 = vsub.s32 3, %v933
  %v935 = vrot.slane %v927, %v934
  %v936 = vlaneseq
  %v937 = vshrl.u32 %v936, 7
  %v938 = vsub.s32 3, %v937
  %v939 = vrot.slane %v928, %v938
  %v940 = vmul.f32 %v935, %v930
  %v941 = vmul.f32 %v939, %v931
  %v942 = vadd.f32 %v924, %v940
  %v943 = vadd.f32 %v925, %v941
  %v944 = vld [vmem:[%s0 + $0x18] sm:$0x44]
  %v945 = vunpack.c.l.bf16 %v944
  %v946 = vunpack.c.h.bf16 %v944
  %v947 = vld [vmem:[%s277] sm:$0xff]
  %v948 = vunpack.c.l.bf16 %v947
  %v949 = vunpack.c.h.bf16 %v947
  %v950 = vlaneseq
  %v951 = vshrl.u32 %v950, 7
  %v952 = vsub.s32 5, %v951
  %v953 = vrot.slane %v945, %v952
  %v954 = vlaneseq
  %v955 = vshrl.u32 %v954, 7
  %v956 = vsub.s32 5, %v955
  %v957 = vrot.slane %v946, %v956
  %v958 = vmul.f32 %v953, %v948
  %v959 = vmul.f32 %v957, %v949
  %v960 = vadd.f32 %v942, %v958
  %v961 = vadd.f32 %v943, %v959
  %v962 = vld [vmem:[%s0 + $0x18] sm:$0x88]
  %v963 = vunpack.c.l.bf16 %v962
  %v964 = vunpack.c.h.bf16 %v962
  %v965 = vld [vmem:[%s296] sm:$0xff]
  %v966 = vunpack.c.l.bf16 %v965
  %v967 = vunpack.c.h.bf16 %v965
  %v968 = vlaneseq
  %v969 = vshrl.u32 %v968, 7
  %v970 = vsub.s32 7, %v969
  %v971 = vrot.slane %v963, %v970
  %v972 = vlaneseq
  %v973 = vshrl.u32 %v972, 7
  %v974 = vsub.s32 7, %v973
  %v975 = vrot.slane %v964, %v974
  %v976 = vmul.f32 %v971, %v966
  %v977 = vmul.f32 %v975, %v967
  %v978 = vadd.f32 %v960, %v976
  %v979 = vadd.f32 %v961, %v977
  %v980 = vld [vmem:[%s0 + $0x20] sm:$0x11]
  %v981 = vunpack.c.l.bf16 %v980
  %v982 = vunpack.c.h.bf16 %v980
  %v983 = vld [vmem:[%s315] sm:$0xff]
  %v984 = vunpack.c.l.bf16 %v983
  %v985 = vunpack.c.h.bf16 %v983
  %v986 = vlaneseq
  %v987 = vshrl.u32 %v986, 7
  %v988 = vsub.s32 1, %v987
  %v989 = vrot.slane %v981, %v988
  %v990 = vlaneseq
  %v991 = vshrl.u32 %v990, 7
  %v992 = vsub.s32 1, %v991
  %v993 = vrot.slane %v982, %v992
  %v994 = vmul.f32 %v989, %v984
  %v995 = vmul.f32 %v993, %v985
  %v996 = vadd.f32 %v978, %v994
  %v997 = vadd.f32 %v979, %v995
  %v998 = vld [vmem:[%s0 + $0x20] sm:$0x22]
  %v999 = vunpack.c.l.bf16 %v998
  %v1000 = vunpack.c.h.bf16 %v998
  %v1001 = vld [vmem:[%s334] sm:$0xff]
  %v1002 = vunpack.c.l.bf16 %v1001
  %v1003 = vunpack.c.h.bf16 %v1001
  %v1004 = vlaneseq
  %v1005 = vshrl.u32 %v1004, 7
  %v1006 = vsub.s32 3, %v1005
  %v1007 = vrot.slane %v999, %v1006
  %v1008 = vlaneseq
  %v1009 = vshrl.u32 %v1008, 7
  %v1010 = vsub.s32 3, %v1009
  %v1011 = vrot.slane %v1000, %v1010
  %v1012 = vmul.f32 %v1007, %v1002
  %v1013 = vmul.f32 %v1011, %v1003
  %v1014 = vadd.f32 %v996, %v1012
  %v1015 = vadd.f32 %v997, %v1013
  %v1016 = vld [vmem:[%s0 + $0x20] sm:$0x44]
  %v1017 = vunpack.c.l.bf16 %v1016
  %v1018 = vunpack.c.h.bf16 %v1016
  %v1019 = vld [vmem:[%s353] sm:$0xff]
  %v1020 = vunpack.c.l.bf16 %v1019
  %v1021 = vunpack.c.h.bf16 %v1019
  %v1022 = vlaneseq
  %v1023 = vshrl.u32 %v1022, 7
  %v1024 = vsub.s32 5, %v1023
  %v1025 = vrot.slane %v1017, %v1024
  %v1026 = vlaneseq
  %v1027 = vshrl.u32 %v1026, 7
  %v1028 = vsub.s32 5, %v1027
  %v1029 = vrot.slane %v1018, %v1028
  %v1030 = vmul.f32 %v1025, %v1020
  %v1031 = vmul.f32 %v1029, %v1021
  %v1032 = vadd.f32 %v1014, %v1030
  %v1033 = vadd.f32 %v1015, %v1031
  %v1034 = vld [vmem:[%s0 + $0x20] sm:$0x88]
  %v1035 = vunpack.c.l.bf16 %v1034
  %v1036 = vunpack.c.h.bf16 %v1034
  %v1037 = vld [vmem:[%s372] sm:$0xff]
  %v1038 = vunpack.c.l.bf16 %v1037
  %v1039 = vunpack.c.h.bf16 %v1037
  %v1040 = vlaneseq
  %v1041 = vshrl.u32 %v1040, 7
  %v1042 = vsub.s32 7, %v1041
  %v1043 = vrot.slane %v1035, %v1042
  %v1044 = vlaneseq
  %v1045 = vshrl.u32 %v1044, 7
  %v1046 = vsub.s32 7, %v1045
  %v1047 = vrot.slane %v1036, %v1046
  %v1048 = vmul.f32 %v1043, %v1038
  %v1049 = vmul.f32 %v1047, %v1039
  %v1050 = vadd.f32 %v1032, %v1048
  %v1051 = vadd.f32 %v1033, %v1049
  %v1052 = vld [vmem:[%s0 + $0x28] sm:$0x11]
  %v1053 = vunpack.c.l.bf16 %v1052
  %v1054 = vunpack.c.h.bf16 %v1052
  %v1055 = vld [vmem:[%s391] sm:$0xff]
  %v1056 = vunpack.c.l.bf16 %v1055
  %v1057 = vunpack.c.h.bf16 %v1055
  %v1058 = vlaneseq
  %v1059 = vshrl.u32 %v1058, 7
  %v1060 = vsub.s32 1, %v1059
  %v1061 = vrot.slane %v1053, %v1060
  %v1062 = vlaneseq
  %v1063 = vshrl.u32 %v1062, 7
  %v1064 = vsub.s32 1, %v1063
  %v1065 = vrot.slane %v1054, %v1064
  %v1066 = vmul.f32 %v1061, %v1056
  %v1067 = vmul.f32 %v1065, %v1057
  %v1068 = vadd.f32 %v1050, %v1066
  %v1069 = vadd.f32 %v1051, %v1067
  %v1070 = vld [vmem:[%s0 + $0x28] sm:$0x22]
  %v1071 = vunpack.c.l.bf16 %v1070
  %v1072 = vunpack.c.h.bf16 %v1070
  %v1073 = vld [vmem:[%s410] sm:$0xff]
  %v1074 = vunpack.c.l.bf16 %v1073
  %v1075 = vunpack.c.h.bf16 %v1073
  %v1076 = vlaneseq
  %v1077 = vshrl.u32 %v1076, 7
  %v1078 = vsub.s32 3, %v1077
  %v1079 = vrot.slane %v1071, %v1078
  %v1080 = vlaneseq
  %v1081 = vshrl.u32 %v1080, 7
  %v1082 = vsub.s32 3, %v1081
  %v1083 = vrot.slane %v1072, %v1082
  %v1084 = vmul.f32 %v1079, %v1074
  %v1085 = vmul.f32 %v1083, %v1075
  %v1086 = vadd.f32 %v1068, %v1084
  %v1087 = vadd.f32 %v1069, %v1085
  %v1088 = vld [vmem:[%s0 + $0x28] sm:$0x44]
  %v1089 = vunpack.c.l.bf16 %v1088
  %v1090 = vunpack.c.h.bf16 %v1088
  %v1091 = vld [vmem:[%s429] sm:$0xff]
  %v1092 = vunpack.c.l.bf16 %v1091
  %v1093 = vunpack.c.h.bf16 %v1091
  %v1094 = vlaneseq
  %v1095 = vshrl.u32 %v1094, 7
  %v1096 = vsub.s32 5, %v1095
  %v1097 = vrot.slane %v1089, %v1096
  %v1098 = vlaneseq
  %v1099 = vshrl.u32 %v1098, 7
  %v1100 = vsub.s32 5, %v1099
  %v1101 = vrot.slane %v1090, %v1100
  %v1102 = vmul.f32 %v1097, %v1092
  %v1103 = vmul.f32 %v1101, %v1093
  %v1104 = vadd.f32 %v1086, %v1102
  %v1105 = vadd.f32 %v1087, %v1103
  %v1106 = vld [vmem:[%s0 + $0x28] sm:$0x88]
  %v1107 = vunpack.c.l.bf16 %v1106
  %v1108 = vunpack.c.h.bf16 %v1106
  %v1109 = vld [vmem:[%s448] sm:$0xff]
  %v1110 = vunpack.c.l.bf16 %v1109
  %v1111 = vunpack.c.h.bf16 %v1109
  %v1112 = vlaneseq
  %v1113 = vshrl.u32 %v1112, 7
  %v1114 = vsub.s32 7, %v1113
  %v1115 = vrot.slane %v1107, %v1114
  %v1116 = vlaneseq
  %v1117 = vshrl.u32 %v1116, 7
  %v1118 = vsub.s32 7, %v1117
  %v1119 = vrot.slane %v1108, %v1118
  %v1120 = vmul.f32 %v1115, %v1110
  %v1121 = vmul.f32 %v1119, %v1111
  %v1122 = vadd.f32 %v1104, %v1120
  %v1123 = vadd.f32 %v1105, %v1121
  %v1124 = vld [vmem:[%s0 + $0x30] sm:$0x11]
  %v1125 = vunpack.c.l.bf16 %v1124
  %v1126 = vunpack.c.h.bf16 %v1124
  %v1127 = vld [vmem:[%s467] sm:$0xff]
  %v1128 = vunpack.c.l.bf16 %v1127
  %v1129 = vunpack.c.h.bf16 %v1127
  %v1130 = vlaneseq
  %v1131 = vshrl.u32 %v1130, 7
  %v1132 = vsub.s32 1, %v1131
  %v1133 = vrot.slane %v1125, %v1132
  %v1134 = vlaneseq
  %v1135 = vshrl.u32 %v1134, 7
  %v1136 = vsub.s32 1, %v1135
  %v1137 = vrot.slane %v1126, %v1136
  %v1138 = vmul.f32 %v1133, %v1128
  %v1139 = vmul.f32 %v1137, %v1129
  %v1140 = vadd.f32 %v1122, %v1138
  %v1141 = vadd.f32 %v1123, %v1139
  %v1142 = vld [vmem:[%s0 + $0x30] sm:$0x22]
  %v1143 = vunpack.c.l.bf16 %v1142
  %v1144 = vunpack.c.h.bf16 %v1142
  %v1145 = vld [vmem:[%s486] sm:$0xff]
  %v1146 = vunpack.c.l.bf16 %v1145
  %v1147 = vunpack.c.h.bf16 %v1145
  %v1148 = vlaneseq
  %v1149 = vshrl.u32 %v1148, 7
  %v1150 = vsub.s32 3, %v1149
  %v1151 = vrot.slane %v1143, %v1150
  %v1152 = vlaneseq
  %v1153 = vshrl.u32 %v1152, 7
  %v1154 = vsub.s32 3, %v1153
  %v1155 = vrot.slane %v1144, %v1154
  %v1156 = vmul.f32 %v1151, %v1146
  %v1157 = vmul.f32 %v1155, %v1147
  %v1158 = vadd.f32 %v1140, %v1156
  %v1159 = vadd.f32 %v1141, %v1157
  %v1160 = vld [vmem:[%s0 + $0x30] sm:$0x44]
  %v1161 = vunpack.c.l.bf16 %v1160
  %v1162 = vunpack.c.h.bf16 %v1160
  %v1163 = vld [vmem:[%s505] sm:$0xff]
  %v1164 = vunpack.c.l.bf16 %v1163
  %v1165 = vunpack.c.h.bf16 %v1163
  %v1166 = vlaneseq
  %v1167 = vshrl.u32 %v1166, 7
  %v1168 = vsub.s32 5, %v1167
  %v1169 = vrot.slane %v1161, %v1168
  %v1170 = vlaneseq
  %v1171 = vshrl.u32 %v1170, 7
  %v1172 = vsub.s32 5, %v1171
  %v1173 = vrot.slane %v1162, %v1172
  %v1174 = vmul.f32 %v1169, %v1164
  %v1175 = vmul.f32 %v1173, %v1165
  %v1176 = vadd.f32 %v1158, %v1174
  %v1177 = vadd.f32 %v1159, %v1175
  %v1178 = vld [vmem:[%s0 + $0x30] sm:$0x88]
  %v1179 = vunpack.c.l.bf16 %v1178
  %v1180 = vunpack.c.h.bf16 %v1178
  %v1181 = vld [vmem:[%s524] sm:$0xff]
  %v1182 = vunpack.c.l.bf16 %v1181
  %v1183 = vunpack.c.h.bf16 %v1181
  %v1184 = vlaneseq
  %v1185 = vshrl.u32 %v1184, 7
  %v1186 = vsub.s32 7, %v1185
  %v1187 = vrot.slane %v1179, %v1186
  %v1188 = vlaneseq
  %v1189 = vshrl.u32 %v1188, 7
  %v1190 = vsub.s32 7, %v1189
  %v1191 = vrot.slane %v1180, %v1190
  %v1192 = vmul.f32 %v1187, %v1182
  %v1193 = vmul.f32 %v1191, %v1183
  %v1194 = vadd.f32 %v1176, %v1192
  %v1195 = vadd.f32 %v1177, %v1193
  %v1196 = vld [vmem:[%s0 + $0x38] sm:$0x11]
  %v1197 = vunpack.c.l.bf16 %v1196
  %v1198 = vunpack.c.h.bf16 %v1196
  %v1199 = vld [vmem:[%s543] sm:$0xff]
  %v1200 = vunpack.c.l.bf16 %v1199
  %v1201 = vunpack.c.h.bf16 %v1199
  %v1202 = vlaneseq
  %v1203 = vshrl.u32 %v1202, 7
  %v1204 = vsub.s32 1, %v1203
  %v1205 = vrot.slane %v1197, %v1204
  %v1206 = vlaneseq
  %v1207 = vshrl.u32 %v1206, 7
  %v1208 = vsub.s32 1, %v1207
  %v1209 = vrot.slane %v1198, %v1208
  %v1210 = vmul.f32 %v1205, %v1200
  %v1211 = vmul.f32 %v1209, %v1201
  %v1212 = vadd.f32 %v1194, %v1210
  %v1213 = vadd.f32 %v1195, %v1211
  %v1214 = vld [vmem:[%s0 + $0x38] sm:$0x22]
  %v1215 = vunpack.c.l.bf16 %v1214
  %v1216 = vunpack.c.h.bf16 %v1214
  %v1217 = vld [vmem:[%s562] sm:$0xff]
  %v1218 = vunpack.c.l.bf16 %v1217
  %v1219 = vunpack.c.h.bf16 %v1217
  %v1220 = vlaneseq
  %v1221 = vshrl.u32 %v1220, 7
  %v1222 = vsub.s32 3, %v1221
  %v1223 = vrot.slane %v1215, %v1222
  %v1224 = vlaneseq
  %v1225 = vshrl.u32 %v1224, 7
  %v1226 = vsub.s32 3, %v1225
  %v1227 = vrot.slane %v1216, %v1226
  %v1228 = vmul.f32 %v1223, %v1218
  %v1229 = vmul.f32 %v1227, %v1219
  %v1230 = vadd.f32 %v1212, %v1228
  %v1231 = vadd.f32 %v1213, %v1229
  %v1232 = vld [vmem:[%s0 + $0x38] sm:$0x44]
  %v1233 = vunpack.c.l.bf16 %v1232
  %v1234 = vunpack.c.h.bf16 %v1232
  %v1235 = vld [vmem:[%s581] sm:$0xff]
  %v1236 = vunpack.c.l.bf16 %v1235
  %v1237 = vunpack.c.h.bf16 %v1235
  %v1238 = vlaneseq
  %v1239 = vshrl.u32 %v1238, 7
  %v1240 = vsub.s32 5, %v1239
  %v1241 = vrot.slane %v1233, %v1240
  %v1242 = vlaneseq
  %v1243 = vshrl.u32 %v1242, 7
  %v1244 = vsub.s32 5, %v1243
  %v1245 = vrot.slane %v1234, %v1244
  %v1246 = vmul.f32 %v1241, %v1236
  %v1247 = vmul.f32 %v1245, %v1237
  %v1248 = vadd.f32 %v1230, %v1246
  %v1249 = vadd.f32 %v1231, %v1247
  %v1250 = vld [vmem:[%s0 + $0x38] sm:$0x88]
  %v1251 = vunpack.c.l.bf16 %v1250
  %v1252 = vunpack.c.h.bf16 %v1250
  %v1253 = vld [vmem:[%s600] sm:$0xff]
  %v1254 = vunpack.c.l.bf16 %v1253
  %v1255 = vunpack.c.h.bf16 %v1253
  %v1256 = vlaneseq
  %v1257 = vshrl.u32 %v1256, 7
  %v1258 = vsub.s32 7, %v1257
  %v1259 = vrot.slane %v1251, %v1258
  %v1260 = vlaneseq
  %v1261 = vshrl.u32 %v1260, 7
  %v1262 = vsub.s32 7, %v1261
  %v1263 = vrot.slane %v1252, %v1262
  %v1264 = vmul.f32 %v1259, %v1254
  %v1265 = vmul.f32 %v1263, %v1255
  %v1266 = vadd.f32 %v1248, %v1264
  %v1267 = vadd.f32 %v1249, %v1265
  %v1268 = vld [vmem:[%s0 + $0x40] sm:$0x11]
  %v1269 = vunpack.c.l.bf16 %v1268
  %v1270 = vunpack.c.h.bf16 %v1268
  %v1271 = vld [vmem:[%s619] sm:$0xff]
  %v1272 = vunpack.c.l.bf16 %v1271
  %v1273 = vunpack.c.h.bf16 %v1271
  %v1274 = vlaneseq
  %v1275 = vshrl.u32 %v1274, 7
  %v1276 = vsub.s32 1, %v1275
  %v1277 = vrot.slane %v1269, %v1276
  %v1278 = vlaneseq
  %v1279 = vshrl.u32 %v1278, 7
  %v1280 = vsub.s32 1, %v1279
  %v1281 = vrot.slane %v1270, %v1280
  %v1282 = vmul.f32 %v1277, %v1272
  %v1283 = vmul.f32 %v1281, %v1273
  %v1284 = vadd.f32 %v1266, %v1282
  %v1285 = vadd.f32 %v1267, %v1283
  %v1286 = vld [vmem:[%s0 + $0x40] sm:$0x22]
  %v1287 = vunpack.c.l.bf16 %v1286
  %v1288 = vunpack.c.h.bf16 %v1286
  %v1289 = vld [vmem:[%s638] sm:$0xff]
  %v1290 = vunpack.c.l.bf16 %v1289
  %v1291 = vunpack.c.h.bf16 %v1289
  %v1292 = vlaneseq
  %v1293 = vshrl.u32 %v1292, 7
  %v1294 = vsub.s32 3, %v1293
  %v1295 = vrot.slane %v1287, %v1294
  %v1296 = vlaneseq
  %v1297 = vshrl.u32 %v1296, 7
  %v1298 = vsub.s32 3, %v1297
  %v1299 = vrot.slane %v1288, %v1298
  %v1300 = vmul.f32 %v1295, %v1290
  %v1301 = vmul.f32 %v1299, %v1291
  %v1302 = vadd.f32 %v1284, %v1300
  %v1303 = vadd.f32 %v1285, %v1301
  %v1304 = vld [vmem:[%s0 + $0x40] sm:$0x44]
  %v1305 = vunpack.c.l.bf16 %v1304
  %v1306 = vunpack.c.h.bf16 %v1304
  %v1307 = vld [vmem:[%s657] sm:$0xff]
  %v1308 = vunpack.c.l.bf16 %v1307
  %v1309 = vunpack.c.h.bf16 %v1307
  %v1310 = vlaneseq
  %v1311 = vshrl.u32 %v1310, 7
  %v1312 = vsub.s32 5, %v1311
  %v1313 = vrot.slane %v1305, %v1312
  %v1314 = vlaneseq
  %v1315 = vshrl.u32 %v1314, 7
  %v1316 = vsub.s32 5, %v1315
  %v1317 = vrot.slane %v1306, %v1316
  %v1318 = vmul.f32 %v1313, %v1308
  %v1319 = vmul.f32 %v1317, %v1309
  %v1320 = vadd.f32 %v1302, %v1318
  %v1321 = vadd.f32 %v1303, %v1319
  %v1322 = vld [vmem:[%s0 + $0x40] sm:$0x88]
  %v1323 = vunpack.c.l.bf16 %v1322
  %v1324 = vunpack.c.h.bf16 %v1322
  %v1325 = vld [vmem:[%s676] sm:$0xff]
  %v1326 = vunpack.c.l.bf16 %v1325
  %v1327 = vunpack.c.h.bf16 %v1325
  %v1328 = vlaneseq
  %v1329 = vshrl.u32 %v1328, 7
  %v1330 = vsub.s32 7, %v1329
  %v1331 = vrot.slane %v1323, %v1330
  %v1332 = vlaneseq
  %v1333 = vshrl.u32 %v1332, 7
  %v1334 = vsub.s32 7, %v1333
  %v1335 = vrot.slane %v1324, %v1334
  %v1336 = vmul.f32 %v1331, %v1326
  %v1337 = vmul.f32 %v1335, %v1327
  %v1338 = vadd.f32 %v1320, %v1336
  %v1339 = vadd.f32 %v1321, %v1337
  %s1340 = scalar_lea.vmem %s2, 16
  %1341 = vst [vmem:[%s1340] sm:$0xff] %v1338
  %1342 = vst [vmem:[%s1340 + $0x8] sm:$0xff] %v1339
  // Predicated region
  $region10: #{forward.1} parent=0 // pred_check
    _
  $region11: #{forward.1} parent=0 // pred_check_branch
    %1344 = sbr.rel (0) target = $region13
  $region12: #{forward.1} parent=0 // pred_region
    _
  $region13: #{forward.1} parent=0 // pred_fallthru
    _
  // Predicated region
  $region14: #{forward.1} parent=0 // pred_check
    _
  $region15: #{forward.1} parent=0 // pred_check_branch
    %1346 = sbr.rel (0) target = $region17
  $region16: #{forward.1} parent=0 // pred_region
    _
  $region17: #{forward.1} parent=0 // pred_fallthru
    _

</llo_original>
